<compile_context>
chip_gen: v6e
topology: v6e:2x2x1
jax: 0.10.0
libtpu: 0.0.40
codegen_flags: <defaults>
</compile_context>

<pallas_src>
import numpy as np
import jax
import jax.numpy as jnp
from jax import lax
from jax.experimental import pallas as pl
from jax.experimental.pallas import tpu as pltpu


def _bigru_kernel(x_ref, h0_ref,
                  wih_f_ref, whh_f_ref, bcomb_f_ref, bhn_f_ref,
                  wih_b_ref, whh_b_ref, bcomb_b_ref, bhn_b_ref,
                  out_ref, hn_ref):
    """Bidirectional single-layer GRU, fully VMEM-resident.

    x_ref:      (T*B, E)   time-major embedded sequence, flattened over (T, B)
    h0_ref:     (2, B, H)  initial hidden state [fwd, bwd]
    wih_*_ref:  (E, 3H)    input weights, gate columns [r|z|n]
    whh_*_ref:  (H, 3H)    hidden weights (bf16), gate columns [r|z|n]
    bcomb_*:    (1, 3H)    b_ih with b_hh folded in for r,z (n keeps only b_ih_n)
    bhn_*:      (1, H)     b_hh_n (must stay inside r*(...))
    out_ref:    (T, B, 2H) fused output: [:, :, :H]=fwd, [:, :, H:]=bwd
    hn_ref:     (2, B, H)  final hidden state
    """
    B = h0_ref.shape[1]
    H = h0_ref.shape[2]
    T = x_ref.shape[0] // B

    x2d = x_ref[...]  # (T*B, E) f32

    # Hoisted input projections: ONE matmul per direction covering all T steps.
    gi_f = jnp.dot(x2d, wih_f_ref[...], preferred_element_type=jnp.float32) + bcomb_f_ref[...]
    gi_b = jnp.dot(x2d, wih_b_ref[...], preferred_element_type=jnp.float32) + bcomb_b_ref[...]

    whh_f = whh_f_ref[...]   # bf16
    whh_b = whh_b_ref[...]   # bf16
    bhn_f = bhn_f_ref[...]   # f32 (1, H)
    bhn_b = bhn_b_ref[...]

    def step(h_prev, gi, whh, bhn):
        # Single fused hidden matmul (bf16 operands, f32 accumulation).
        gh = jnp.dot(h_prev.astype(whh.dtype), whh, preferred_element_type=jnp.float32)
        r = jax.nn.sigmoid(gi[:, :H] + gh[:, :H])
        z = jax.nn.sigmoid(gi[:, H:2 * H] + gh[:, H:2 * H])
        n = jnp.tanh(gi[:, 2 * H:] + r * (gh[:, 2 * H:] + bhn))
        return (1.0 - z) * n + z * h_prev

    h_f = h0_ref[0]
    h_b = h0_ref[1]
    # Fully unrolled, interleaved fwd/bwd recurrence (T static, all indices static).
    for i in range(T):
        tb = T - 1 - i
        h_f = step(h_f, gi_f[i * B:(i + 1) * B, :], whh_f, bhn_f)
        h_b = step(h_b, gi_b[tb * B:(tb + 1) * B, :], whh_b, bhn_b)
        out_ref[i, :, :H] = h_f
        out_ref[tb, :, H:] = h_b

    hn_ref[0] = h_f
    hn_ref[1] = h_b


def prepare_params(raw):
    """One-time weight re-layout (kept OUT of the per-call path)."""
    H = raw["w_hh_f"].shape[1]  # w_hh is (3H, H)

    def prep(w_ih, w_hh, b_ih, b_hh):
        wih = jnp.asarray(w_ih, jnp.float32).T                       # (E, 3H), cols [r|z|n]
        whh = jnp.asarray(w_hh, jnp.float32).T.astype(jnp.bfloat16)  # (H, 3H) bf16 for MXU
        b_ih = jnp.asarray(b_ih, jnp.float32)
        b_hh = jnp.asarray(b_hh, jnp.float32)
        # Fold b_hh into the hoisted projection for r,z; keep b_hh_n separate.
        bcomb = jnp.concatenate([b_ih[:2 * H] + b_hh[:2 * H], b_ih[2 * H:]]).reshape(1, 3 * H)
        bhn = b_hh[2 * H:].reshape(1, H)
        return wih, whh, bcomb, bhn

    wih_f, whh_f, bcomb_f, bhn_f = prep(raw["w_ih_f"], raw["w_hh_f"], raw["b_ih_f"], raw["b_hh_f"])
    wih_b, whh_b, bcomb_b, bhn_b = prep(raw["w_ih_b"], raw["w_hh_b"], raw["b_ih_b"], raw["b_hh_b"])
    return dict(embedding=jnp.asarray(raw["embedding"], jnp.float32),
                wih_f=wih_f, whh_f=whh_f, bcomb_f=bcomb_f, bhn_f=bhn_f,
                wih_b=wih_b, whh_b=whh_b, bcomb_b=bcomb_b, bhn_b=bhn_b)


def text_encoder_forward(token_ids, hidden, p):
    """Mirrors TextEncoder.forward(input, hidden) -> (output, hidden)."""
    B, T = token_ids.shape
    E = p["embedding"].shape[1]
    H = p["whh_f"].shape[0]

    # Embedding lookup (gather) + time-major flatten -- glue in plain JAX.
    emb = jnp.take(p["embedding"], token_ids, axis=0)          # (B, T, E)
    x2d = jnp.transpose(emb, (1, 0, 2)).reshape(T * B, E)      # (T*B, E), time-major

    vmem = pl.BlockSpec(memory_space=pltpu.MemorySpace.VMEM)
    out_tm, h_n = pl.pallas_call(
        _bigru_kernel,
        out_shape=(jax.ShapeDtypeStruct((T, B, 2 * H), jnp.float32),   # fused fwd|bwd output
                   jax.ShapeDtypeStruct((2, B, H), jnp.float32)),      # final hidden
        in_specs=[vmem] * 10,
        out_specs=(vmem, vmem),
    )(x2d, hidden,
      p["wih_f"], p["whh_f"], p["bcomb_f"], p["bhn_f"],
      p["wih_b"], p["whh_b"], p["bcomb_b"], p["bhn_b"])

    output = jnp.transpose(out_tm, (1, 0, 2))                  # (B, T, 2H), batch_first
    return output, h_n


def reference_forward(token_ids, hidden, params):
    """Pure-JAX reference of PyTorch nn.GRU (bidirectional, batch_first), all f32."""
    H = params["hidden_size"]
    emb = params["embedding"][token_ids]                 # (B, T, E)
    x_tm = jnp.transpose(emb, (1, 0, 2))                 # (T, B, E)

    def cell(x_t, h_prev, wih, whh, bih, bhh):
        gi = x_t @ wih.T + bih
        gh = h_prev @ whh.T + bhh
        r = jax.nn.sigmoid(gi[:, :H] + gh[:, :H])
        z = jax.nn.sigmoid(gi[:, H:2 * H] + gh[:, H:2 * H])
        n = jnp.tanh(gi[:, 2 * H:] + r * gh[:, 2 * H:])
        return (1.0 - z) * n + z * h_prev

    def fwd_scan(h, x_t):
        h_new = cell(x_t, h, params["w_ih_f"], params["w_hh_f"],
                     params["b_ih_f"], params["b_hh_f"])
        return h_new, h_new

    def bwd_scan(h, x_t):
        h_new = cell(x_t, h, params["w_ih_b"], params["w_hh_b"],
                     params["b_ih_b"], params["b_hh_b"])
        return h_new, h_new

    h_f, out_f = lax.scan(fwd_scan, hidden[0], x_tm)
    h_b, out_b_rev = lax.scan(bwd_scan, hidden[1], x_tm[::-1])
    out_b = out_b_rev[::-1]
    output = jnp.transpose(jnp.concatenate([out_f, out_b], axis=-1), (1, 0, 2))
    h_n = jnp.stack([h_f, h_b])
    return output, h_n


if __name__ == "__main__":
    # Small shapes consistent with the module: batch=2, seq=8, vocab=50,
    # embedding_dim=16, hidden_size=32, num_layers=1, bidirectional GRU.
    B, T, V, E, H = 2, 8, 50, 16, 32

    key = jax.random.PRNGKey(0)
    ks = jax.random.split(key, 10)
    s = 1.0 / np.sqrt(H)  # PyTorch GRU init range

    raw_params = {
        "hidden_size": H,
        "embedding": jax.random.normal(ks[0], (V, E), jnp.float32),
        "w_ih_f": jax.random.uniform(ks[1], (3 * H, E), jnp.float32, -s, s),
        "w_hh_f": jax.random.uniform(ks[2], (3 * H, H), jnp.float32, -s, s),
        "b_ih_f": jax.random.uniform(ks[3], (3 * H,), jnp.float32, -s, s),
        "b_hh_f": jax.random.uniform(ks[4], (3 * H,), jnp.float32, -s, s),
        "w_ih_b": jax.random.uniform(ks[5], (3 * H, E), jnp.float32, -s, s),
        "w_hh_b": jax.random.uniform(ks[6], (3 * H, H), jnp.float32, -s, s),
        "b_ih_b": jax.random.uniform(ks[7], (3 * H,), jnp.float32, -s, s),
        "b_hh_b": jax.random.uniform(ks[8], (3 * H,), jnp.float32, -s, s),
    }
    prepared = prepare_params(raw_params)

    token_ids = jax.random.randint(ks[9], (B, T), 0, V, jnp.int32)
    # nn.GRU(bidirectional) hidden is (num_layers*2, B, H); use zeros.
    h0 = jnp.zeros((2, B, H), jnp.float32)

    fwd = jax.jit(text_encoder_forward)
    output, h_n = fwd(token_ids, h0, prepared)
    output = jax.block_until_ready(output)
    h_n = jax.block_until_ready(h_n)

    assert output.shape == (B, T, 2 * H), output.shape
    assert h_n.shape == (2, B, H), h_n.shape

    ref_out, ref_hn = reference_forward(token_ids, h0, raw_params)
    np.testing.assert_allclose(np.asarray(output), np.asarray(ref_out), atol=2e-2, rtol=2e-2)
    np.testing.assert_allclose(np.asarray(h_n), np.asarray(ref_hn), atol=2e-2, rtol=2e-2)

    print("KERNEL_OK")
</pallas_src>

<mosaic_0001>
module attributes {stable_mosaic.version = 11 : i64} {
  func.func @_bigru_kernel(%arg0: memref<16x16xf32, #tpu.memory_space<vmem>>, %arg1: memref<2x2x32xf32, #tpu.memory_space<vmem>>, %arg2: memref<16x96xf32, #tpu.memory_space<vmem>>, %arg3: memref<32x96xbf16, #tpu.memory_space<vmem>>, %arg4: memref<1x96xf32, #tpu.memory_space<vmem>>, %arg5: memref<1x32xf32, #tpu.memory_space<vmem>>, %arg6: memref<16x96xf32, #tpu.memory_space<vmem>>, %arg7: memref<32x96xbf16, #tpu.memory_space<vmem>>, %arg8: memref<1x96xf32, #tpu.memory_space<vmem>>, %arg9: memref<1x32xf32, #tpu.memory_space<vmem>>, %arg10: memref<8x2x64xf32, #tpu.memory_space<vmem>>, %arg11: memref<2x2x32xf32, #tpu.memory_space<vmem>>) attributes {dimension_semantics = [], scalar_prefetch = 0 : i64, scratch_operands = 0 : i64, tpu.core_type = #tpu.core_type<tc>} {
    %c0 = arith.constant 0 : index
    %c0_0 = arith.constant 0 : index
    %0 = vector.load %arg0[%c0, %c0_0] : memref<16x16xf32, #tpu.memory_space<vmem>>, vector<16x16xf32>
    %c0_1 = arith.constant 0 : index
    %c0_2 = arith.constant 0 : index
    %1 = vector.load %arg2[%c0_1, %c0_2] : memref<16x96xf32, #tpu.memory_space<vmem>>, vector<16x96xf32>
    %cst = arith.constant dense<0.000000e+00> : vector<16x96xf32>
    %2 = tpu.matmul %0, %1, %cst {dimension_numbers = #tpu.dot_dimension_numbers<[1], [0], [0], [1], [0, 0, 1, 1], [], []>} : vector<16x16xf32>, vector<16x96xf32>, vector<16x96xf32> -> vector<16x96xf32>
    %c0_3 = arith.constant 0 : index
    %c0_4 = arith.constant 0 : index
    %3 = vector.load %arg4[%c0_3, %c0_4] : memref<1x96xf32, #tpu.memory_space<vmem>>, vector<1x96xf32>
    %4 = vector.broadcast %3 : vector<1x96xf32> to vector<16x96xf32>
    %5 = arith.addf %2, %4 : vector<16x96xf32>
    %c0_5 = arith.constant 0 : index
    %c0_6 = arith.constant 0 : index
    %6 = vector.load %arg6[%c0_5, %c0_6] : memref<16x96xf32, #tpu.memory_space<vmem>>, vector<16x96xf32>
    %cst_7 = arith.constant dense<0.000000e+00> : vector<16x96xf32>
    %7 = tpu.matmul %0, %6, %cst_7 {dimension_numbers = #tpu.dot_dimension_numbers<[1], [0], [0], [1], [0, 0, 1, 1], [], []>} : vector<16x16xf32>, vector<16x96xf32>, vector<16x96xf32> -> vector<16x96xf32>
    %c0_8 = arith.constant 0 : index
    %c0_9 = arith.constant 0 : index
    %8 = vector.load %arg8[%c0_8, %c0_9] : memref<1x96xf32, #tpu.memory_space<vmem>>, vector<1x96xf32>
    %9 = vector.broadcast %8 : vector<1x96xf32> to vector<16x96xf32>
    %10 = arith.addf %7, %9 : vector<16x96xf32>
    %c0_10 = arith.constant 0 : index
    %c0_11 = arith.constant 0 : index
    %11 = vector.load %arg3[%c0_10, %c0_11] : memref<32x96xbf16, #tpu.memory_space<vmem>>, vector<32x96xbf16>
    %c0_12 = arith.constant 0 : index
    %c0_13 = arith.constant 0 : index
    %12 = vector.load %arg7[%c0_12, %c0_13] : memref<32x96xbf16, #tpu.memory_space<vmem>>, vector<32x96xbf16>
    %c0_14 = arith.constant 0 : index
    %c0_15 = arith.constant 0 : index
    %13 = vector.load %arg5[%c0_14, %c0_15] : memref<1x32xf32, #tpu.memory_space<vmem>>, vector<1x32xf32>
    %c0_16 = arith.constant 0 : index
    %c0_17 = arith.constant 0 : index
    %14 = vector.load %arg9[%c0_16, %c0_17] : memref<1x32xf32, #tpu.memory_space<vmem>>, vector<1x32xf32>
    %c0_18 = arith.constant 0 : index
    %c0_19 = arith.constant 0 : index
    %c0_20 = arith.constant 0 : index
    %15 = vector.load %arg1[%c0_18, %c0_19, %c0_20] : memref<2x2x32xf32, #tpu.memory_space<vmem>>, vector<1x2x32xf32>
    %16 = vector.shape_cast %15 : vector<1x2x32xf32> to vector<2x32xf32>
    %c1 = arith.constant 1 : index
    %c0_21 = arith.constant 0 : index
    %c0_22 = arith.constant 0 : index
    %17 = vector.load %arg1[%c1, %c0_21, %c0_22] : memref<2x2x32xf32, #tpu.memory_space<vmem>>, vector<1x2x32xf32>
    %18 = vector.shape_cast %17 : vector<1x2x32xf32> to vector<2x32xf32>
    %19 = vector.extract_strided_slice %5 {offsets = [0, 0], sizes = [2, 96], strides = [1, 1]} : vector<16x96xf32> to vector<2x96xf32>
    %20 = arith.truncf %16 : vector<2x32xf32> to vector<2x32xbf16>
    %cst_23 = arith.constant dense<0.000000e+00> : vector<2x96xf32>
    %21 = tpu.matmul %20, %11, %cst_23 {dimension_numbers = #tpu.dot_dimension_numbers<[1], [0], [0], [1], [0, 0, 1, 1], [], []>} : vector<2x32xbf16>, vector<32x96xbf16>, vector<2x96xf32> -> vector<2x96xf32>
    %22 = vector.extract_strided_slice %19 {offsets = [0, 0], sizes = [2, 32], strides = [1, 1]} : vector<2x96xf32> to vector<2x32xf32>
    %23 = vector.extract_strided_slice %21 {offsets = [0, 0], sizes = [2, 32], strides = [1, 1]} : vector<2x96xf32> to vector<2x32xf32>
    %24 = arith.addf %22, %23 : vector<2x32xf32>
    %25 = arith.negf %24 : vector<2x32xf32>
    %26 = math.exp %25 : vector<2x32xf32>
    %cst_24 = arith.constant 1.000000e+00 : f32
    %27 = vector.broadcast %cst_24 : f32 to vector<2x32xf32>
    %28 = arith.addf %27, %26 : vector<2x32xf32>
    %29 = arith.divf %27, %28 : vector<2x32xf32>
    %30 = vector.extract_strided_slice %19 {offsets = [0, 32], sizes = [2, 32], strides = [1, 1]} : vector<2x96xf32> to vector<2x32xf32>
    %31 = vector.extract_strided_slice %21 {offsets = [0, 32], sizes = [2, 32], strides = [1, 1]} : vector<2x96xf32> to vector<2x32xf32>
    %32 = arith.addf %30, %31 : vector<2x32xf32>
    %33 = arith.negf %32 : vector<2x32xf32>
    %34 = math.exp %33 : vector<2x32xf32>
    %cst_25 = arith.constant 1.000000e+00 : f32
    %35 = vector.broadcast %cst_25 : f32 to vector<2x32xf32>
    %36 = arith.addf %35, %34 : vector<2x32xf32>
    %37 = arith.divf %35, %36 : vector<2x32xf32>
    %38 = vector.extract_strided_slice %19 {offsets = [0, 64], sizes = [2, 32], strides = [1, 1]} : vector<2x96xf32> to vector<2x32xf32>
    %39 = vector.extract_strided_slice %21 {offsets = [0, 64], sizes = [2, 32], strides = [1, 1]} : vector<2x96xf32> to vector<2x32xf32>
    %40 = vector.broadcast %13 : vector<1x32xf32> to vector<2x32xf32>
    %41 = arith.addf %39, %40 : vector<2x32xf32>
    %42 = arith.mulf %29, %41 : vector<2x32xf32>
    %43 = arith.addf %38, %42 : vector<2x32xf32>
    %44 = math.tanh %43 : vector<2x32xf32>
    %cst_26 = arith.constant 1.000000e+00 : f32
    %45 = vector.broadcast %cst_26 : f32 to vector<2x32xf32>
    %46 = arith.subf %45, %37 : vector<2x32xf32>
    %47 = arith.mulf %46, %44 : vector<2x32xf32>
    %48 = arith.mulf %37, %16 : vector<2x32xf32>
    %49 = arith.addf %47, %48 : vector<2x32xf32>
    %50 = vector.extract_strided_slice %10 {offsets = [14, 0], sizes = [2, 96], strides = [1, 1]} : vector<16x96xf32> to vector<2x96xf32>
    %51 = arith.truncf %18 : vector<2x32xf32> to vector<2x32xbf16>
    %cst_27 = arith.constant dense<0.000000e+00> : vector<2x96xf32>
    %52 = tpu.matmul %51, %12, %cst_27 {dimension_numbers = #tpu.dot_dimension_numbers<[1], [0], [0], [1], [0, 0, 1, 1], [], []>} : vector<2x32xbf16>, vector<32x96xbf16>, vector<2x96xf32> -> vector<2x96xf32>
    %53 = vector.extract_strided_slice %50 {offsets = [0, 0], sizes = [2, 32], strides = [1, 1]} : vector<2x96xf32> to vector<2x32xf32>
    %54 = vector.extract_strided_slice %52 {offsets = [0, 0], sizes = [2, 32], strides = [1, 1]} : vector<2x96xf32> to vector<2x32xf32>
    %55 = arith.addf %53, %54 : vector<2x32xf32>
    %56 = arith.negf %55 : vector<2x32xf32>
    %57 = math.exp %56 : vector<2x32xf32>
    %cst_28 = arith.constant 1.000000e+00 : f32
    %58 = vector.broadcast %cst_28 : f32 to vector<2x32xf32>
    %59 = arith.addf %58, %57 : vector<2x32xf32>
    %60 = arith.divf %58, %59 : vector<2x32xf32>
    %61 = vector.extract_strided_slice %50 {offsets = [0, 32], sizes = [2, 32], strides = [1, 1]} : vector<2x96xf32> to vector<2x32xf32>
    %62 = vector.extract_strided_slice %52 {offsets = [0, 32], sizes = [2, 32], strides = [1, 1]} : vector<2x96xf32> to vector<2x32xf32>
    %63 = arith.addf %61, %62 : vector<2x32xf32>
    %64 = arith.negf %63 : vector<2x32xf32>
    %65 = math.exp %64 : vector<2x32xf32>
    %cst_29 = arith.constant 1.000000e+00 : f32
    %66 = vector.broadcast %cst_29 : f32 to vector<2x32xf32>
    %67 = arith.addf %66, %65 : vector<2x32xf32>
    %68 = arith.divf %66, %67 : vector<2x32xf32>
    %69 = vector.extract_strided_slice %50 {offsets = [0, 64], sizes = [2, 32], strides = [1, 1]} : vector<2x96xf32> to vector<2x32xf32>
    %70 = vector.extract_strided_slice %52 {offsets = [0, 64], sizes = [2, 32], strides = [1, 1]} : vector<2x96xf32> to vector<2x32xf32>
    %71 = vector.broadcast %14 : vector<1x32xf32> to vector<2x32xf32>
    %72 = arith.addf %70, %71 : vector<2x32xf32>
    %73 = arith.mulf %60, %72 : vector<2x32xf32>
    %74 = arith.addf %69, %73 : vector<2x32xf32>
    %75 = math.tanh %74 : vector<2x32xf32>
    %cst_30 = arith.constant 1.000000e+00 : f32
    %76 = vector.broadcast %cst_30 : f32 to vector<2x32xf32>
    %77 = arith.subf %76, %68 : vector<2x32xf32>
    %78 = arith.mulf %77, %75 : vector<2x32xf32>
    %79 = arith.mulf %68, %18 : vector<2x32xf32>
    %80 = arith.addf %78, %79 : vector<2x32xf32>
    %c0_31 = arith.constant 0 : index
    %c0_32 = arith.constant 0 : index
    %c0_33 = arith.constant 0 : index
    %81 = vector.load %arg10[%c0_31, %c0_32, %c0_33] : memref<8x2x64xf32, #tpu.memory_space<vmem>>, vector<1x2x32xf32>
    %82 = vector.shape_cast %81 : vector<1x2x32xf32> to vector<2x32xf32>
    %83 = vector.shape_cast %49 : vector<2x32xf32> to vector<1x2x32xf32>
    tpu.vector_store %arg10[%c0_31, %c0_32, %c0_33], %83 {strides = array<i32>} : memref<8x2x64xf32, #tpu.memory_space<vmem>>, vector<1x2x32xf32>,
    %c7 = arith.constant 7 : index
    %c0_34 = arith.constant 0 : index
    %c32 = arith.constant 32 : index
    %84 = vector.load %arg10[%c7, %c0_34, %c32] : memref<8x2x64xf32, #tpu.memory_space<vmem>>, vector<1x2x32xf32>
    %85 = vector.shape_cast %84 : vector<1x2x32xf32> to vector<2x32xf32>
    %86 = vector.shape_cast %80 : vector<2x32xf32> to vector<1x2x32xf32>
    tpu.vector_store %arg10[%c7, %c0_34, %c32], %86 {strides = array<i32>} : memref<8x2x64xf32, #tpu.memory_space<vmem>>, vector<1x2x32xf32>,
    %87 = vector.extract_strided_slice %5 {offsets = [2, 0], sizes = [2, 96], strides = [1, 1]} : vector<16x96xf32> to vector<2x96xf32>
    %88 = arith.truncf %49 : vector<2x32xf32> to vector<2x32xbf16>
    %cst_35 = arith.constant dense<0.000000e+00> : vector<2x96xf32>
    %89 = tpu.matmul %88, %11, %cst_35 {dimension_numbers = #tpu.dot_dimension_numbers<[1], [0], [0], [1], [0, 0, 1, 1], [], []>} : vector<2x32xbf16>, vector<32x96xbf16>, vector<2x96xf32> -> vector<2x96xf32>
    %90 = vector.extract_strided_slice %87 {offsets = [0, 0], sizes = [2, 32], strides = [1, 1]} : vector<2x96xf32> to vector<2x32xf32>
    %91 = vector.extract_strided_slice %89 {offsets = [0, 0], sizes = [2, 32], strides = [1, 1]} : vector<2x96xf32> to vector<2x32xf32>
    %92 = arith.addf %90, %91 : vector<2x32xf32>
    %93 = arith.negf %92 : vector<2x32xf32>
    %94 = math.exp %93 : vector<2x32xf32>
    %cst_36 = arith.constant 1.000000e+00 : f32
    %95 = vector.broadcast %cst_36 : f32 to vector<2x32xf32>
    %96 = arith.addf %95, %94 : vector<2x32xf32>
    %97 = arith.divf %95, %96 : vector<2x32xf32>
    %98 = vector.extract_strided_slice %87 {offsets = [0, 32], sizes = [2, 32], strides = [1, 1]} : vector<2x96xf32> to vector<2x32xf32>
    %99 = vector.extract_strided_slice %89 {offsets = [0, 32], sizes = [2, 32], strides = [1, 1]} : vector<2x96xf32> to vector<2x32xf32>
    %100 = arith.addf %98, %99 : vector<2x32xf32>
    %101 = arith.negf %100 : vector<2x32xf32>
    %102 = math.exp %101 : vector<2x32xf32>
    %cst_37 = arith.constant 1.000000e+00 : f32
    %103 = vector.broadcast %cst_37 : f32 to vector<2x32xf32>
    %104 = arith.addf %103, %102 : vector<2x32xf32>
    %105 = arith.divf %103, %104 : vector<2x32xf32>
    %106 = vector.extract_strided_slice %87 {offsets = [0, 64], sizes = [2, 32], strides = [1, 1]} : vector<2x96xf32> to vector<2x32xf32>
    %107 = vector.extract_strided_slice %89 {offsets = [0, 64], sizes = [2, 32], strides = [1, 1]} : vector<2x96xf32> to vector<2x32xf32>
    %108 = vector.broadcast %13 : vector<1x32xf32> to vector<2x32xf32>
    %109 = arith.addf %107, %108 : vector<2x32xf32>
    %110 = arith.mulf %97, %109 : vector<2x32xf32>
    %111 = arith.addf %106, %110 : vector<2x32xf32>
    %112 = math.tanh %111 : vector<2x32xf32>
    %cst_38 = arith.constant 1.000000e+00 : f32
    %113 = vector.broadcast %cst_38 : f32 to vector<2x32xf32>
    %114 = arith.subf %113, %105 : vector<2x32xf32>
    %115 = arith.mulf %114, %112 : vector<2x32xf32>
    %116 = arith.mulf %105, %49 : vector<2x32xf32>
    %117 = arith.addf %115, %116 : vector<2x32xf32>
    %118 = vector.extract_strided_slice %10 {offsets = [12, 0], sizes = [2, 96], strides = [1, 1]} : vector<16x96xf32> to vector<2x96xf32>
    %119 = arith.truncf %80 : vector<2x32xf32> to vector<2x32xbf16>
    %cst_39 = arith.constant dense<0.000000e+00> : vector<2x96xf32>
    %120 = tpu.matmul %119, %12, %cst_39 {dimension_numbers = #tpu.dot_dimension_numbers<[1], [0], [0], [1], [0, 0, 1, 1], [], []>} : vector<2x32xbf16>, vector<32x96xbf16>, vector<2x96xf32> -> vector<2x96xf32>
    %121 = vector.extract_strided_slice %118 {offsets = [0, 0], sizes = [2, 32], strides = [1, 1]} : vector<2x96xf32> to vector<2x32xf32>
    %122 = vector.extract_strided_slice %120 {offsets = [0, 0], sizes = [2, 32], strides = [1, 1]} : vector<2x96xf32> to vector<2x32xf32>
    %123 = arith.addf %121, %122 : vector<2x32xf32>
    %124 = arith.negf %123 : vector<2x32xf32>
    %125 = math.exp %124 : vector<2x32xf32>
    %cst_40 = arith.constant 1.000000e+00 : f32
    %126 = vector.broadcast %cst_40 : f32 to vector<2x32xf32>
    %127 = arith.addf %126, %125 : vector<2x32xf32>
    %128 = arith.divf %126, %127 : vector<2x32xf32>
    %129 = vector.extract_strided_slice %118 {offsets = [0, 32], sizes = [2, 32], strides = [1, 1]} : vector<2x96xf32> to vector<2x32xf32>
    %130 = vector.extract_strided_slice %120 {offsets = [0, 32], sizes = [2, 32], strides = [1, 1]} : vector<2x96xf32> to vector<2x32xf32>
    %131 = arith.addf %129, %130 : vector<2x32xf32>
    %132 = arith.negf %131 : vector<2x32xf32>
    %133 = math.exp %132 : vector<2x32xf32>
    %cst_41 = arith.constant 1.000000e+00 : f32
    %134 = vector.broadcast %cst_41 : f32 to vector<2x32xf32>
    %135 = arith.addf %134, %133 : vector<2x32xf32>
    %136 = arith.divf %134, %135 : vector<2x32xf32>
    %137 = vector.extract_strided_slice %118 {offsets = [0, 64], sizes = [2, 32], strides = [1, 1]} : vector<2x96xf32> to vector<2x32xf32>
    %138 = vector.extract_strided_slice %120 {offsets = [0, 64], sizes = [2, 32], strides = [1, 1]} : vector<2x96xf32> to vector<2x32xf32>
    %139 = vector.broadcast %14 : vector<1x32xf32> to vector<2x32xf32>
    %140 = arith.addf %138, %139 : vector<2x32xf32>
    %141 = arith.mulf %128, %140 : vector<2x32xf32>
    %142 = arith.addf %137, %141 : vector<2x32xf32>
    %143 = math.tanh %142 : vector<2x32xf32>
    %cst_42 = arith.constant 1.000000e+00 : f32
    %144 = vector.broadcast %cst_42 : f32 to vector<2x32xf32>
    %145 = arith.subf %144, %136 : vector<2x32xf32>
    %146 = arith.mulf %145, %143 : vector<2x32xf32>
    %147 = arith.mulf %136, %80 : vector<2x32xf32>
    %148 = arith.addf %146, %147 : vector<2x32xf32>
    %c1_43 = arith.constant 1 : index
    %c0_44 = arith.constant 0 : index
    %c0_45 = arith.constant 0 : index
    %149 = vector.load %arg10[%c1_43, %c0_44, %c0_45] : memref<8x2x64xf32, #tpu.memory_space<vmem>>, vector<1x2x32xf32>
    %150 = vector.shape_cast %149 : vector<1x2x32xf32> to vector<2x32xf32>
    %151 = vector.shape_cast %117 : vector<2x32xf32> to vector<1x2x32xf32>
    tpu.vector_store %arg10[%c1_43, %c0_44, %c0_45], %151 {strides = array<i32>} : memref<8x2x64xf32, #tpu.memory_space<vmem>>, vector<1x2x32xf32>,
    %c6 = arith.constant 6 : index
    %c0_46 = arith.constant 0 : index
    %c32_47 = arith.constant 32 : index
    %152 = vector.load %arg10[%c6, %c0_46, %c32_47] : memref<8x2x64xf32, #tpu.memory_space<vmem>>, vector<1x2x32xf32>
    %153 = vector.shape_cast %152 : vector<1x2x32xf32> to vector<2x32xf32>
    %154 = vector.shape_cast %148 : vector<2x32xf32> to vector<1x2x32xf32>
    tpu.vector_store %arg10[%c6, %c0_46, %c32_47], %154 {strides = array<i32>} : memref<8x2x64xf32, #tpu.memory_space<vmem>>, vector<1x2x32xf32>,
    %155 = vector.extract_strided_slice %5 {offsets = [4, 0], sizes = [2, 96], strides = [1, 1]} : vector<16x96xf32> to vector<2x96xf32>
    %156 = arith.truncf %117 : vector<2x32xf32> to vector<2x32xbf16>
    %cst_48 = arith.constant dense<0.000000e+00> : vector<2x96xf32>
    %157 = tpu.matmul %156, %11, %cst_48 {dimension_numbers = #tpu.dot_dimension_numbers<[1], [0], [0], [1], [0, 0, 1, 1], [], []>} : vector<2x32xbf16>, vector<32x96xbf16>, vector<2x96xf32> -> vector<2x96xf32>
    %158 = vector.extract_strided_slice %155 {offsets = [0, 0], sizes = [2, 32], strides = [1, 1]} : vector<2x96xf32> to vector<2x32xf32>
    %159 = vector.extract_strided_slice %157 {offsets = [0, 0], sizes = [2, 32], strides = [1, 1]} : vector<2x96xf32> to vector<2x32xf32>
    %160 = arith.addf %158, %159 : vector<2x32xf32>
    %161 = arith.negf %160 : vector<2x32xf32>
    %162 = math.exp %161 : vector<2x32xf32>
    %cst_49 = arith.constant 1.000000e+00 : f32
    %163 = vector.broadcast %cst_49 : f32 to vector<2x32xf32>
    %164 = arith.addf %163, %162 : vector<2x32xf32>
    %165 = arith.divf %163, %164 : vector<2x32xf32>
    %166 = vector.extract_strided_slice %155 {offsets = [0, 32], sizes = [2, 32], strides = [1, 1]} : vector<2x96xf32> to vector<2x32xf32>
    %167 = vector.extract_strided_slice %157 {offsets = [0, 32], sizes = [2, 32], strides = [1, 1]} : vector<2x96xf32> to vector<2x32xf32>
    %168 = arith.addf %166, %167 : vector<2x32xf32>
    %169 = arith.negf %168 : vector<2x32xf32>
    %170 = math.exp %169 : vector<2x32xf32>
    %cst_50 = arith.constant 1.000000e+00 : f32
    %171 = vector.broadcast %cst_50 : f32 to vector<2x32xf32>
    %172 = arith.addf %171, %170 : vector<2x32xf32>
    %173 = arith.divf %171, %172 : vector<2x32xf32>
    %174 = vector.extract_strided_slice %155 {offsets = [0, 64], sizes = [2, 32], strides = [1, 1]} : vector<2x96xf32> to vector<2x32xf32>
    %175 = vector.extract_strided_slice %157 {offsets = [0, 64], sizes = [2, 32], strides = [1, 1]} : vector<2x96xf32> to vector<2x32xf32>
    %176 = vector.broadcast %13 : vector<1x32xf32> to vector<2x32xf32>
    %177 = arith.addf %175, %176 : vector<2x32xf32>
    %178 = arith.mulf %165, %177 : vector<2x32xf32>
    %179 = arith.addf %174, %178 : vector<2x32xf32>
    %180 = math.tanh %179 : vector<2x32xf32>
    %cst_51 = arith.constant 1.000000e+00 : f32
    %181 = vector.broadcast %cst_51 : f32 to vector<2x32xf32>
    %182 = arith.subf %181, %173 : vector<2x32xf32>
    %183 = arith.mulf %182, %180 : vector<2x32xf32>
    %184 = arith.mulf %173, %117 : vector<2x32xf32>
    %185 = arith.addf %183, %184 : vector<2x32xf32>
    %186 = vector.extract_strided_slice %10 {offsets = [10, 0], sizes = [2, 96], strides = [1, 1]} : vector<16x96xf32> to vector<2x96xf32>
    %187 = arith.truncf %148 : vector<2x32xf32> to vector<2x32xbf16>
    %cst_52 = arith.constant dense<0.000000e+00> : vector<2x96xf32>
    %188 = tpu.matmul %187, %12, %cst_52 {dimension_numbers = #tpu.dot_dimension_numbers<[1], [0], [0], [1], [0, 0, 1, 1], [], []>} : vector<2x32xbf16>, vector<32x96xbf16>, vector<2x96xf32> -> vector<2x96xf32>
    %189 = vector.extract_strided_slice %186 {offsets = [0, 0], sizes = [2, 32], strides = [1, 1]} : vector<2x96xf32> to vector<2x32xf32>
    %190 = vector.extract_strided_slice %188 {offsets = [0, 0], sizes = [2, 32], strides = [1, 1]} : vector<2x96xf32> to vector<2x32xf32>
    %191 = arith.addf %189, %190 : vector<2x32xf32>
    %192 = arith.negf %191 : vector<2x32xf32>
    %193 = math.exp %192 : vector<2x32xf32>
    %cst_53 = arith.constant 1.000000e+00 : f32
    %194 = vector.broadcast %cst_53 : f32 to vector<2x32xf32>
    %195 = arith.addf %194, %193 : vector<2x32xf32>
    %196 = arith.divf %194, %195 : vector<2x32xf32>
    %197 = vector.extract_strided_slice %186 {offsets = [0, 32], sizes = [2, 32], strides = [1, 1]} : vector<2x96xf32> to vector<2x32xf32>
    %198 = vector.extract_strided_slice %188 {offsets = [0, 32], sizes = [2, 32], strides = [1, 1]} : vector<2x96xf32> to vector<2x32xf32>
    %199 = arith.addf %197, %198 : vector<2x32xf32>
    %200 = arith.negf %199 : vector<2x32xf32>
    %201 = math.exp %200 : vector<2x32xf32>
    %cst_54 = arith.constant 1.000000e+00 : f32
    %202 = vector.broadcast %cst_54 : f32 to vector<2x32xf32>
    %203 = arith.addf %202, %201 : vector<2x32xf32>
    %204 = arith.divf %202, %203 : vector<2x32xf32>
    %205 = vector.extract_strided_slice %186 {offsets = [0, 64], sizes = [2, 32], strides = [1, 1]} : vector<2x96xf32> to vector<2x32xf32>
    %206 = vector.extract_strided_slice %188 {offsets = [0, 64], sizes = [2, 32], strides = [1, 1]} : vector<2x96xf32> to vector<2x32xf32>
    %207 = vector.broadcast %14 : vector<1x32xf32> to vector<2x32xf32>
    %208 = arith.addf %206, %207 : vector<2x32xf32>
    %209 = arith.mulf %196, %208 : vector<2x32xf32>
    %210 = arith.addf %205, %209 : vector<2x32xf32>
    %211 = math.tanh %210 : vector<2x32xf32>
    %cst_55 = arith.constant 1.000000e+00 : f32
    %212 = vector.broadcast %cst_55 : f32 to vector<2x32xf32>
    %213 = arith.subf %212, %204 : vector<2x32xf32>
    %214 = arith.mulf %213, %211 : vector<2x32xf32>
    %215 = arith.mulf %204, %148 : vector<2x32xf32>
    %216 = arith.addf %214, %215 : vector<2x32xf32>
    %c2 = arith.constant 2 : index
    %c0_56 = arith.constant 0 : index
    %c0_57 = arith.constant 0 : index
    %217 = vector.load %arg10[%c2, %c0_56, %c0_57] : memref<8x2x64xf32, #tpu.memory_space<vmem>>, vector<1x2x32xf32>
    %218 = vector.shape_cast %217 : vector<1x2x32xf32> to vector<2x32xf32>
    %219 = vector.shape_cast %185 : vector<2x32xf32> to vector<1x2x32xf32>
    tpu.vector_store %arg10[%c2, %c0_56, %c0_57], %219 {strides = array<i32>} : memref<8x2x64xf32, #tpu.memory_space<vmem>>, vector<1x2x32xf32>,
    %c5 = arith.constant 5 : index
    %c0_58 = arith.constant 0 : index
    %c32_59 = arith.constant 32 : index
    %220 = vector.load %arg10[%c5, %c0_58, %c32_59] : memref<8x2x64xf32, #tpu.memory_space<vmem>>, vector<1x2x32xf32>
    %221 = vector.shape_cast %220 : vector<1x2x32xf32> to vector<2x32xf32>
    %222 = vector.shape_cast %216 : vector<2x32xf32> to vector<1x2x32xf32>
    tpu.vector_store %arg10[%c5, %c0_58, %c32_59], %222 {strides = array<i32>} : memref<8x2x64xf32, #tpu.memory_space<vmem>>, vector<1x2x32xf32>,
    %223 = vector.extract_strided_slice %5 {offsets = [6, 0], sizes = [2, 96], strides = [1, 1]} : vector<16x96xf32> to vector<2x96xf32>
    %224 = arith.truncf %185 : vector<2x32xf32> to vector<2x32xbf16>
    %cst_60 = arith.constant dense<0.000000e+00> : vector<2x96xf32>
    %225 = tpu.matmul %224, %11, %cst_60 {dimension_numbers = #tpu.dot_dimension_numbers<[1], [0], [0], [1], [0, 0, 1, 1], [], []>} : vector<2x32xbf16>, vector<32x96xbf16>, vector<2x96xf32> -> vector<2x96xf32>
    %226 = vector.extract_strided_slice %223 {offsets = [0, 0], sizes = [2, 32], strides = [1, 1]} : vector<2x96xf32> to vector<2x32xf32>
    %227 = vector.extract_strided_slice %225 {offsets = [0, 0], sizes = [2, 32], strides = [1, 1]} : vector<2x96xf32> to vector<2x32xf32>
    %228 = arith.addf %226, %227 : vector<2x32xf32>
    %229 = arith.negf %228 : vector<2x32xf32>
    %230 = math.exp %229 : vector<2x32xf32>
    %cst_61 = arith.constant 1.000000e+00 : f32
    %231 = vector.broadcast %cst_61 : f32 to vector<2x32xf32>
    %232 = arith.addf %231, %230 : vector<2x32xf32>
    %233 = arith.divf %231, %232 : vector<2x32xf32>
    %234 = vector.extract_strided_slice %223 {offsets = [0, 32], sizes = [2, 32], strides = [1, 1]} : vector<2x96xf32> to vector<2x32xf32>
    %235 = vector.extract_strided_slice %225 {offsets = [0, 32], sizes = [2, 32], strides = [1, 1]} : vector<2x96xf32> to vector<2x32xf32>
    %236 = arith.addf %234, %235 : vector<2x32xf32>
    %237 = arith.negf %236 : vector<2x32xf32>
    %238 = math.exp %237 : vector<2x32xf32>
    %cst_62 = arith.constant 1.000000e+00 : f32
    %239 = vector.broadcast %cst_62 : f32 to vector<2x32xf32>
    %240 = arith.addf %239, %238 : vector<2x32xf32>
    %241 = arith.divf %239, %240 : vector<2x32xf32>
    %242 = vector.extract_strided_slice %223 {offsets = [0, 64], sizes = [2, 32], strides = [1, 1]} : vector<2x96xf32> to vector<2x32xf32>
    %243 = vector.extract_strided_slice %225 {offsets = [0, 64], sizes = [2, 32], strides = [1, 1]} : vector<2x96xf32> to vector<2x32xf32>
    %244 = vector.broadcast %13 : vector<1x32xf32> to vector<2x32xf32>
    %245 = arith.addf %243, %244 : vector<2x32xf32>
    %246 = arith.mulf %233, %245 : vector<2x32xf32>
    %247 = arith.addf %242, %246 : vector<2x32xf32>
    %248 = math.tanh %247 : vector<2x32xf32>
    %cst_63 = arith.constant 1.000000e+00 : f32
    %249 = vector.broadcast %cst_63 : f32 to vector<2x32xf32>
    %250 = arith.subf %249, %241 : vector<2x32xf32>
    %251 = arith.mulf %250, %248 : vector<2x32xf32>
    %252 = arith.mulf %241, %185 : vector<2x32xf32>
    %253 = arith.addf %251, %252 : vector<2x32xf32>
    %254 = vector.extract_strided_slice %10 {offsets = [8, 0], sizes = [2, 96], strides = [1, 1]} : vector<16x96xf32> to vector<2x96xf32>
    %255 = arith.truncf %216 : vector<2x32xf32> to vector<2x32xbf16>
    %cst_64 = arith.constant dense<0.000000e+00> : vector<2x96xf32>
    %256 = tpu.matmul %255, %12, %cst_64 {dimension_numbers = #tpu.dot_dimension_numbers<[1], [0], [0], [1], [0, 0, 1, 1], [], []>} : vector<2x32xbf16>, vector<32x96xbf16>, vector<2x96xf32> -> vector<2x96xf32>
    %257 = vector.extract_strided_slice %254 {offsets = [0, 0], sizes = [2, 32], strides = [1, 1]} : vector<2x96xf32> to vector<2x32xf32>
    %258 = vector.extract_strided_slice %256 {offsets = [0, 0], sizes = [2, 32], strides = [1, 1]} : vector<2x96xf32> to vector<2x32xf32>
    %259 = arith.addf %257, %258 : vector<2x32xf32>
    %260 = arith.negf %259 : vector<2x32xf32>
    %261 = math.exp %260 : vector<2x32xf32>
    %cst_65 = arith.constant 1.000000e+00 : f32
    %262 = vector.broadcast %cst_65 : f32 to vector<2x32xf32>
    %263 = arith.addf %262, %261 : vector<2x32xf32>
    %264 = arith.divf %262, %263 : vector<2x32xf32>
    %265 = vector.extract_strided_slice %254 {offsets = [0, 32], sizes = [2, 32], strides = [1, 1]} : vector<2x96xf32> to vector<2x32xf32>
    %266 = vector.extract_strided_slice %256 {offsets = [0, 32], sizes = [2, 32], strides = [1, 1]} : vector<2x96xf32> to vector<2x32xf32>
    %267 = arith.addf %265, %266 : vector<2x32xf32>
    %268 = arith.negf %267 : vector<2x32xf32>
    %269 = math.exp %268 : vector<2x32xf32>
    %cst_66 = arith.constant 1.000000e+00 : f32
    %270 = vector.broadcast %cst_66 : f32 to vector<2x32xf32>
    %271 = arith.addf %270, %269 : vector<2x32xf32>
    %272 = arith.divf %270, %271 : vector<2x32xf32>
    %273 = vector.extract_strided_slice %254 {offsets = [0, 64], sizes = [2, 32], strides = [1, 1]} : vector<2x96xf32> to vector<2x32xf32>
    %274 = vector.extract_strided_slice %256 {offsets = [0, 64], sizes = [2, 32], strides = [1, 1]} : vector<2x96xf32> to vector<2x32xf32>
    %275 = vector.broadcast %14 : vector<1x32xf32> to vector<2x32xf32>
    %276 = arith.addf %274, %275 : vector<2x32xf32>
    %277 = arith.mulf %264, %276 : vector<2x32xf32>
    %278 = arith.addf %273, %277 : vector<2x32xf32>
    %279 = math.tanh %278 : vector<2x32xf32>
    %cst_67 = arith.constant 1.000000e+00 : f32
    %280 = vector.broadcast %cst_67 : f32 to vector<2x32xf32>
    %281 = arith.subf %280, %272 : vector<2x32xf32>
    %282 = arith.mulf %281, %279 : vector<2x32xf32>
    %283 = arith.mulf %272, %216 : vector<2x32xf32>
    %284 = arith.addf %282, %283 : vector<2x32xf32>
    %c3 = arith.constant 3 : index
    %c0_68 = arith.constant 0 : index
    %c0_69 = arith.constant 0 : index
    %285 = vector.load %arg10[%c3, %c0_68, %c0_69] : memref<8x2x64xf32, #tpu.memory_space<vmem>>, vector<1x2x32xf32>
    %286 = vector.shape_cast %285 : vector<1x2x32xf32> to vector<2x32xf32>
    %287 = vector.shape_cast %253 : vector<2x32xf32> to vector<1x2x32xf32>
    tpu.vector_store %arg10[%c3, %c0_68, %c0_69], %287 {strides = array<i32>} : memref<8x2x64xf32, #tpu.memory_space<vmem>>, vector<1x2x32xf32>,
    %c4 = arith.constant 4 : index
    %c0_70 = arith.constant 0 : index
    %c32_71 = arith.constant 32 : index
    %288 = vector.load %arg10[%c4, %c0_70, %c32_71] : memref<8x2x64xf32, #tpu.memory_space<vmem>>, vector<1x2x32xf32>
    %289 = vector.shape_cast %288 : vector<1x2x32xf32> to vector<2x32xf32>
    %290 = vector.shape_cast %284 : vector<2x32xf32> to vector<1x2x32xf32>
    tpu.vector_store %arg10[%c4, %c0_70, %c32_71], %290 {strides = array<i32>} : memref<8x2x64xf32, #tpu.memory_space<vmem>>, vector<1x2x32xf32>,
    %291 = vector.extract_strided_slice %5 {offsets = [8, 0], sizes = [2, 96], strides = [1, 1]} : vector<16x96xf32> to vector<2x96xf32>
    %292 = arith.truncf %253 : vector<2x32xf32> to vector<2x32xbf16>
    %cst_72 = arith.constant dense<0.000000e+00> : vector<2x96xf32>
    %293 = tpu.matmul %292, %11, %cst_72 {dimension_numbers = #tpu.dot_dimension_numbers<[1], [0], [0], [1], [0, 0, 1, 1], [], []>} : vector<2x32xbf16>, vector<32x96xbf16>, vector<2x96xf32> -> vector<2x96xf32>
    %294 = vector.extract_strided_slice %291 {offsets = [0, 0], sizes = [2, 32], strides = [1, 1]} : vector<2x96xf32> to vector<2x32xf32>
    %295 = vector.extract_strided_slice %293 {offsets = [0, 0], sizes = [2, 32], strides = [1, 1]} : vector<2x96xf32> to vector<2x32xf32>
    %296 = arith.addf %294, %295 : vector<2x32xf32>
    %297 = arith.negf %296 : vector<2x32xf32>
    %298 = math.exp %297 : vector<2x32xf32>
    %cst_73 = arith.constant 1.000000e+00 : f32
    %299 = vector.broadcast %cst_73 : f32 to vector<2x32xf32>
    %300 = arith.addf %299, %298 : vector<2x32xf32>
    %301 = arith.divf %299, %300 : vector<2x32xf32>
    %302 = vector.extract_strided_slice %291 {offsets = [0, 32], sizes = [2, 32], strides = [1, 1]} : vector<2x96xf32> to vector<2x32xf32>
    %303 = vector.extract_strided_slice %293 {offsets = [0, 32], sizes = [2, 32], strides = [1, 1]} : vector<2x96xf32> to vector<2x32xf32>
    %304 = arith.addf %302, %303 : vector<2x32xf32>
    %305 = arith.negf %304 : vector<2x32xf32>
    %306 = math.exp %305 : vector<2x32xf32>
    %cst_74 = arith.constant 1.000000e+00 : f32
    %307 = vector.broadcast %cst_74 : f32 to vector<2x32xf32>
    %308 = arith.addf %307, %306 : vector<2x32xf32>
    %309 = arith.divf %307, %308 : vector<2x32xf32>
    %310 = vector.extract_strided_slice %291 {offsets = [0, 64], sizes = [2, 32], strides = [1, 1]} : vector<2x96xf32> to vector<2x32xf32>
    %311 = vector.extract_strided_slice %293 {offsets = [0, 64], sizes = [2, 32], strides = [1, 1]} : vector<2x96xf32> to vector<2x32xf32>
    %312 = vector.broadcast %13 : vector<1x32xf32> to vector<2x32xf32>
    %313 = arith.addf %311, %312 : vector<2x32xf32>
    %314 = arith.mulf %301, %313 : vector<2x32xf32>
    %315 = arith.addf %310, %314 : vector<2x32xf32>
    %316 = math.tanh %315 : vector<2x32xf32>
    %cst_75 = arith.constant 1.000000e+00 : f32
    %317 = vector.broadcast %cst_75 : f32 to vector<2x32xf32>
    %318 = arith.subf %317, %309 : vector<2x32xf32>
    %319 = arith.mulf %318, %316 : vector<2x32xf32>
    %320 = arith.mulf %309, %253 : vector<2x32xf32>
    %321 = arith.addf %319, %320 : vector<2x32xf32>
    %322 = vector.extract_strided_slice %10 {offsets = [6, 0], sizes = [2, 96], strides = [1, 1]} : vector<16x96xf32> to vector<2x96xf32>
    %323 = arith.truncf %284 : vector<2x32xf32> to vector<2x32xbf16>
    %cst_76 = arith.constant dense<0.000000e+00> : vector<2x96xf32>
    %324 = tpu.matmul %323, %12, %cst_76 {dimension_numbers = #tpu.dot_dimension_numbers<[1], [0], [0], [1], [0, 0, 1, 1], [], []>} : vector<2x32xbf16>, vector<32x96xbf16>, vector<2x96xf32> -> vector<2x96xf32>
    %325 = vector.extract_strided_slice %322 {offsets = [0, 0], sizes = [2, 32], strides = [1, 1]} : vector<2x96xf32> to vector<2x32xf32>
    %326 = vector.extract_strided_slice %324 {offsets = [0, 0], sizes = [2, 32], strides = [1, 1]} : vector<2x96xf32> to vector<2x32xf32>
    %327 = arith.addf %325, %326 : vector<2x32xf32>
    %328 = arith.negf %327 : vector<2x32xf32>
    %329 = math.exp %328 : vector<2x32xf32>
    %cst_77 = arith.constant 1.000000e+00 : f32
    %330 = vector.broadcast %cst_77 : f32 to vector<2x32xf32>
    %331 = arith.addf %330, %329 : vector<2x32xf32>
    %332 = arith.divf %330, %331 : vector<2x32xf32>
    %333 = vector.extract_strided_slice %322 {offsets = [0, 32], sizes = [2, 32], strides = [1, 1]} : vector<2x96xf32> to vector<2x32xf32>
    %334 = vector.extract_strided_slice %324 {offsets = [0, 32], sizes = [2, 32], strides = [1, 1]} : vector<2x96xf32> to vector<2x32xf32>
    %335 = arith.addf %333, %334 : vector<2x32xf32>
    %336 = arith.negf %335 : vector<2x32xf32>
    %337 = math.exp %336 : vector<2x32xf32>
    %cst_78 = arith.constant 1.000000e+00 : f32
    %338 = vector.broadcast %cst_78 : f32 to vector<2x32xf32>
    %339 = arith.addf %338, %337 : vector<2x32xf32>
    %340 = arith.divf %338, %339 : vector<2x32xf32>
    %341 = vector.extract_strided_slice %322 {offsets = [0, 64], sizes = [2, 32], strides = [1, 1]} : vector<2x96xf32> to vector<2x32xf32>
    %342 = vector.extract_strided_slice %324 {offsets = [0, 64], sizes = [2, 32], strides = [1, 1]} : vector<2x96xf32> to vector<2x32xf32>
    %343 = vector.broadcast %14 : vector<1x32xf32> to vector<2x32xf32>
    %344 = arith.addf %342, %343 : vector<2x32xf32>
    %345 = arith.mulf %332, %344 : vector<2x32xf32>
    %346 = arith.addf %341, %345 : vector<2x32xf32>
    %347 = math.tanh %346 : vector<2x32xf32>
    %cst_79 = arith.constant 1.000000e+00 : f32
    %348 = vector.broadcast %cst_79 : f32 to vector<2x32xf32>
    %349 = arith.subf %348, %340 : vector<2x32xf32>
    %350 = arith.mulf %349, %347 : vector<2x32xf32>
    %351 = arith.mulf %340, %284 : vector<2x32xf32>
    %352 = arith.addf %350, %351 : vector<2x32xf32>
    %c4_80 = arith.constant 4 : index
    %c0_81 = arith.constant 0 : index
    %c0_82 = arith.constant 0 : index
    %353 = vector.load %arg10[%c4_80, %c0_81, %c0_82] : memref<8x2x64xf32, #tpu.memory_space<vmem>>, vector<1x2x32xf32>
    %354 = vector.shape_cast %353 : vector<1x2x32xf32> to vector<2x32xf32>
    %355 = vector.shape_cast %321 : vector<2x32xf32> to vector<1x2x32xf32>
    tpu.vector_store %arg10[%c4_80, %c0_81, %c0_82], %355 {strides = array<i32>} : memref<8x2x64xf32, #tpu.memory_space<vmem>>, vector<1x2x32xf32>,
    %c3_83 = arith.constant 3 : index
    %c0_84 = arith.constant 0 : index
    %c32_85 = arith.constant 32 : index
    %356 = vector.load %arg10[%c3_83, %c0_84, %c32_85] : memref<8x2x64xf32, #tpu.memory_space<vmem>>, vector<1x2x32xf32>
    %357 = vector.shape_cast %356 : vector<1x2x32xf32> to vector<2x32xf32>
    %358 = vector.shape_cast %352 : vector<2x32xf32> to vector<1x2x32xf32>
    tpu.vector_store %arg10[%c3_83, %c0_84, %c32_85], %358 {strides = array<i32>} : memref<8x2x64xf32, #tpu.memory_space<vmem>>, vector<1x2x32xf32>,
    %359 = vector.extract_strided_slice %5 {offsets = [10, 0], sizes = [2, 96], strides = [1, 1]} : vector<16x96xf32> to vector<2x96xf32>
    %360 = arith.truncf %321 : vector<2x32xf32> to vector<2x32xbf16>
    %cst_86 = arith.constant dense<0.000000e+00> : vector<2x96xf32>
    %361 = tpu.matmul %360, %11, %cst_86 {dimension_numbers = #tpu.dot_dimension_numbers<[1], [0], [0], [1], [0, 0, 1, 1], [], []>} : vector<2x32xbf16>, vector<32x96xbf16>, vector<2x96xf32> -> vector<2x96xf32>
    %362 = vector.extract_strided_slice %359 {offsets = [0, 0], sizes = [2, 32], strides = [1, 1]} : vector<2x96xf32> to vector<2x32xf32>
    %363 = vector.extract_strided_slice %361 {offsets = [0, 0], sizes = [2, 32], strides = [1, 1]} : vector<2x96xf32> to vector<2x32xf32>
    %364 = arith.addf %362, %363 : vector<2x32xf32>
    %365 = arith.negf %364 : vector<2x32xf32>
    %366 = math.exp %365 : vector<2x32xf32>
    %cst_87 = arith.constant 1.000000e+00 : f32
    %367 = vector.broadcast %cst_87 : f32 to vector<2x32xf32>
    %368 = arith.addf %367, %366 : vector<2x32xf32>
    %369 = arith.divf %367, %368 : vector<2x32xf32>
    %370 = vector.extract_strided_slice %359 {offsets = [0, 32], sizes = [2, 32], strides = [1, 1]} : vector<2x96xf32> to vector<2x32xf32>
    %371 = vector.extract_strided_slice %361 {offsets = [0, 32], sizes = [2, 32], strides = [1, 1]} : vector<2x96xf32> to vector<2x32xf32>
    %372 = arith.addf %370, %371 : vector<2x32xf32>
    %373 = arith.negf %372 : vector<2x32xf32>
    %374 = math.exp %373 : vector<2x32xf32>
    %cst_88 = arith.constant 1.000000e+00 : f32
    %375 = vector.broadcast %cst_88 : f32 to vector<2x32xf32>
    %376 = arith.addf %375, %374 : vector<2x32xf32>
    %377 = arith.divf %375, %376 : vector<2x32xf32>
    %378 = vector.extract_strided_slice %359 {offsets = [0, 64], sizes = [2, 32], strides = [1, 1]} : vector<2x96xf32> to vector<2x32xf32>
    %379 = vector.extract_strided_slice %361 {offsets = [0, 64], sizes = [2, 32], strides = [1, 1]} : vector<2x96xf32> to vector<2x32xf32>
    %380 = vector.broadcast %13 : vector<1x32xf32> to vector<2x32xf32>
    %381 = arith.addf %379, %380 : vector<2x32xf32>
    %382 = arith.mulf %369, %381 : vector<2x32xf32>
    %383 = arith.addf %378, %382 : vector<2x32xf32>
    %384 = math.tanh %383 : vector<2x32xf32>
    %cst_89 = arith.constant 1.000000e+00 : f32
    %385 = vector.broadcast %cst_89 : f32 to vector<2x32xf32>
    %386 = arith.subf %385, %377 : vector<2x32xf32>
    %387 = arith.mulf %386, %384 : vector<2x32xf32>
    %388 = arith.mulf %377, %321 : vector<2x32xf32>
    %389 = arith.addf %387, %388 : vector<2x32xf32>
    %390 = vector.extract_strided_slice %10 {offsets = [4, 0], sizes = [2, 96], strides = [1, 1]} : vector<16x96xf32> to vector<2x96xf32>
    %391 = arith.truncf %352 : vector<2x32xf32> to vector<2x32xbf16>
    %cst_90 = arith.constant dense<0.000000e+00> : vector<2x96xf32>
    %392 = tpu.matmul %391, %12, %cst_90 {dimension_numbers = #tpu.dot_dimension_numbers<[1], [0], [0], [1], [0, 0, 1, 1], [], []>} : vector<2x32xbf16>, vector<32x96xbf16>, vector<2x96xf32> -> vector<2x96xf32>
    %393 = vector.extract_strided_slice %390 {offsets = [0, 0], sizes = [2, 32], strides = [1, 1]} : vector<2x96xf32> to vector<2x32xf32>
    %394 = vector.extract_strided_slice %392 {offsets = [0, 0], sizes = [2, 32], strides = [1, 1]} : vector<2x96xf32> to vector<2x32xf32>
    %395 = arith.addf %393, %394 : vector<2x32xf32>
    %396 = arith.negf %395 : vector<2x32xf32>
    %397 = math.exp %396 : vector<2x32xf32>
    %cst_91 = arith.constant 1.000000e+00 : f32
    %398 = vector.broadcast %cst_91 : f32 to vector<2x32xf32>
    %399 = arith.addf %398, %397 : vector<2x32xf32>
    %400 = arith.divf %398, %399 : vector<2x32xf32>
    %401 = vector.extract_strided_slice %390 {offsets = [0, 32], sizes = [2, 32], strides = [1, 1]} : vector<2x96xf32> to vector<2x32xf32>
    %402 = vector.extract_strided_slice %392 {offsets = [0, 32], sizes = [2, 32], strides = [1, 1]} : vector<2x96xf32> to vector<2x32xf32>
    %403 = arith.addf %401, %402 : vector<2x32xf32>
    %404 = arith.negf %403 : vector<2x32xf32>
    %405 = math.exp %404 : vector<2x32xf32>
    %cst_92 = arith.constant 1.000000e+00 : f32
    %406 = vector.broadcast %cst_92 : f32 to vector<2x32xf32>
    %407 = arith.addf %406, %405 : vector<2x32xf32>
    %408 = arith.divf %406, %407 : vector<2x32xf32>
    %409 = vector.extract_strided_slice %390 {offsets = [0, 64], sizes = [2, 32], strides = [1, 1]} : vector<2x96xf32> to vector<2x32xf32>
    %410 = vector.extract_strided_slice %392 {offsets = [0, 64], sizes = [2, 32], strides = [1, 1]} : vector<2x96xf32> to vector<2x32xf32>
    %411 = vector.broadcast %14 : vector<1x32xf32> to vector<2x32xf32>
    %412 = arith.addf %410, %411 : vector<2x32xf32>
    %413 = arith.mulf %400, %412 : vector<2x32xf32>
    %414 = arith.addf %409, %413 : vector<2x32xf32>
    %415 = math.tanh %414 : vector<2x32xf32>
    %cst_93 = arith.constant 1.000000e+00 : f32
    %416 = vector.broadcast %cst_93 : f32 to vector<2x32xf32>
    %417 = arith.subf %416, %408 : vector<2x32xf32>
    %418 = arith.mulf %417, %415 : vector<2x32xf32>
    %419 = arith.mulf %408, %352 : vector<2x32xf32>
    %420 = arith.addf %418, %419 : vector<2x32xf32>
    %c5_94 = arith.constant 5 : index
    %c0_95 = arith.constant 0 : index
    %c0_96 = arith.constant 0 : index
    %421 = vector.load %arg10[%c5_94, %c0_95, %c0_96] : memref<8x2x64xf32, #tpu.memory_space<vmem>>, vector<1x2x32xf32>
    %422 = vector.shape_cast %421 : vector<1x2x32xf32> to vector<2x32xf32>
    %423 = vector.shape_cast %389 : vector<2x32xf32> to vector<1x2x32xf32>
    tpu.vector_store %arg10[%c5_94, %c0_95, %c0_96], %423 {strides = array<i32>} : memref<8x2x64xf32, #tpu.memory_space<vmem>>, vector<1x2x32xf32>,
    %c2_97 = arith.constant 2 : index
    %c0_98 = arith.constant 0 : index
    %c32_99 = arith.constant 32 : index
    %424 = vector.load %arg10[%c2_97, %c0_98, %c32_99] : memref<8x2x64xf32, #tpu.memory_space<vmem>>, vector<1x2x32xf32>
    %425 = vector.shape_cast %424 : vector<1x2x32xf32> to vector<2x32xf32>
    %426 = vector.shape_cast %420 : vector<2x32xf32> to vector<1x2x32xf32>
    tpu.vector_store %arg10[%c2_97, %c0_98, %c32_99], %426 {strides = array<i32>} : memref<8x2x64xf32, #tpu.memory_space<vmem>>, vector<1x2x32xf32>,
    %427 = vector.extract_strided_slice %5 {offsets = [12, 0], sizes = [2, 96], strides = [1, 1]} : vector<16x96xf32> to vector<2x96xf32>
    %428 = arith.truncf %389 : vector<2x32xf32> to vector<2x32xbf16>
    %cst_100 = arith.constant dense<0.000000e+00> : vector<2x96xf32>
    %429 = tpu.matmul %428, %11, %cst_100 {dimension_numbers = #tpu.dot_dimension_numbers<[1], [0], [0], [1], [0, 0, 1, 1], [], []>} : vector<2x32xbf16>, vector<32x96xbf16>, vector<2x96xf32> -> vector<2x96xf32>
    %430 = vector.extract_strided_slice %427 {offsets = [0, 0], sizes = [2, 32], strides = [1, 1]} : vector<2x96xf32> to vector<2x32xf32>
    %431 = vector.extract_strided_slice %429 {offsets = [0, 0], sizes = [2, 32], strides = [1, 1]} : vector<2x96xf32> to vector<2x32xf32>
    %432 = arith.addf %430, %431 : vector<2x32xf32>
    %433 = arith.negf %432 : vector<2x32xf32>
    %434 = math.exp %433 : vector<2x32xf32>
    %cst_101 = arith.constant 1.000000e+00 : f32
    %435 = vector.broadcast %cst_101 : f32 to vector<2x32xf32>
    %436 = arith.addf %435, %434 : vector<2x32xf32>
    %437 = arith.divf %435, %436 : vector<2x32xf32>
    %438 = vector.extract_strided_slice %427 {offsets = [0, 32], sizes = [2, 32], strides = [1, 1]} : vector<2x96xf32> to vector<2x32xf32>
    %439 = vector.extract_strided_slice %429 {offsets = [0, 32], sizes = [2, 32], strides = [1, 1]} : vector<2x96xf32> to vector<2x32xf32>
    %440 = arith.addf %438, %439 : vector<2x32xf32>
    %441 = arith.negf %440 : vector<2x32xf32>
    %442 = math.exp %441 : vector<2x32xf32>
    %cst_102 = arith.constant 1.000000e+00 : f32
    %443 = vector.broadcast %cst_102 : f32 to vector<2x32xf32>
    %444 = arith.addf %443, %442 : vector<2x32xf32>
    %445 = arith.divf %443, %444 : vector<2x32xf32>
    %446 = vector.extract_strided_slice %427 {offsets = [0, 64], sizes = [2, 32], strides = [1, 1]} : vector<2x96xf32> to vector<2x32xf32>
    %447 = vector.extract_strided_slice %429 {offsets = [0, 64], sizes = [2, 32], strides = [1, 1]} : vector<2x96xf32> to vector<2x32xf32>
    %448 = vector.broadcast %13 : vector<1x32xf32> to vector<2x32xf32>
    %449 = arith.addf %447, %448 : vector<2x32xf32>
    %450 = arith.mulf %437, %449 : vector<2x32xf32>
    %451 = arith.addf %446, %450 : vector<2x32xf32>
    %452 = math.tanh %451 : vector<2x32xf32>
    %cst_103 = arith.constant 1.000000e+00 : f32
    %453 = vector.broadcast %cst_103 : f32 to vector<2x32xf32>
    %454 = arith.subf %453, %445 : vector<2x32xf32>
    %455 = arith.mulf %454, %452 : vector<2x32xf32>
    %456 = arith.mulf %445, %389 : vector<2x32xf32>
    %457 = arith.addf %455, %456 : vector<2x32xf32>
    %458 = vector.extract_strided_slice %10 {offsets = [2, 0], sizes = [2, 96], strides = [1, 1]} : vector<16x96xf32> to vector<2x96xf32>
    %459 = arith.truncf %420 : vector<2x32xf32> to vector<2x32xbf16>
    %cst_104 = arith.constant dense<0.000000e+00> : vector<2x96xf32>
    %460 = tpu.matmul %459, %12, %cst_104 {dimension_numbers = #tpu.dot_dimension_numbers<[1], [0], [0], [1], [0, 0, 1, 1], [], []>} : vector<2x32xbf16>, vector<32x96xbf16>, vector<2x96xf32> -> vector<2x96xf32>
    %461 = vector.extract_strided_slice %458 {offsets = [0, 0], sizes = [2, 32], strides = [1, 1]} : vector<2x96xf32> to vector<2x32xf32>
    %462 = vector.extract_strided_slice %460 {offsets = [0, 0], sizes = [2, 32], strides = [1, 1]} : vector<2x96xf32> to vector<2x32xf32>
    %463 = arith.addf %461, %462 : vector<2x32xf32>
    %464 = arith.negf %463 : vector<2x32xf32>
    %465 = math.exp %464 : vector<2x32xf32>
    %cst_105 = arith.constant 1.000000e+00 : f32
    %466 = vector.broadcast %cst_105 : f32 to vector<2x32xf32>
    %467 = arith.addf %466, %465 : vector<2x32xf32>
    %468 = arith.divf %466, %467 : vector<2x32xf32>
    %469 = vector.extract_strided_slice %458 {offsets = [0, 32], sizes = [2, 32], strides = [1, 1]} : vector<2x96xf32> to vector<2x32xf32>
    %470 = vector.extract_strided_slice %460 {offsets = [0, 32], sizes = [2, 32], strides = [1, 1]} : vector<2x96xf32> to vector<2x32xf32>
    %471 = arith.addf %469, %470 : vector<2x32xf32>
    %472 = arith.negf %471 : vector<2x32xf32>
    %473 = math.exp %472 : vector<2x32xf32>
    %cst_106 = arith.constant 1.000000e+00 : f32
    %474 = vector.broadcast %cst_106 : f32 to vector<2x32xf32>
    %475 = arith.addf %474, %473 : vector<2x32xf32>
    %476 = arith.divf %474, %475 : vector<2x32xf32>
    %477 = vector.extract_strided_slice %458 {offsets = [0, 64], sizes = [2, 32], strides = [1, 1]} : vector<2x96xf32> to vector<2x32xf32>
    %478 = vector.extract_strided_slice %460 {offsets = [0, 64], sizes = [2, 32], strides = [1, 1]} : vector<2x96xf32> to vector<2x32xf32>
    %479 = vector.broadcast %14 : vector<1x32xf32> to vector<2x32xf32>
    %480 = arith.addf %478, %479 : vector<2x32xf32>
    %481 = arith.mulf %468, %480 : vector<2x32xf32>
    %482 = arith.addf %477, %481 : vector<2x32xf32>
    %483 = math.tanh %482 : vector<2x32xf32>
    %cst_107 = arith.constant 1.000000e+00 : f32
    %484 = vector.broadcast %cst_107 : f32 to vector<2x32xf32>
    %485 = arith.subf %484, %476 : vector<2x32xf32>
    %486 = arith.mulf %485, %483 : vector<2x32xf32>
    %487 = arith.mulf %476, %420 : vector<2x32xf32>
    %488 = arith.addf %486, %487 : vector<2x32xf32>
    %c6_108 = arith.constant 6 : index
    %c0_109 = arith.constant 0 : index
    %c0_110 = arith.constant 0 : index
    %489 = vector.load %arg10[%c6_108, %c0_109, %c0_110] : memref<8x2x64xf32, #tpu.memory_space<vmem>>, vector<1x2x32xf32>
    %490 = vector.shape_cast %489 : vector<1x2x32xf32> to vector<2x32xf32>
    %491 = vector.shape_cast %457 : vector<2x32xf32> to vector<1x2x32xf32>
    tpu.vector_store %arg10[%c6_108, %c0_109, %c0_110], %491 {strides = array<i32>} : memref<8x2x64xf32, #tpu.memory_space<vmem>>, vector<1x2x32xf32>,
    %c1_111 = arith.constant 1 : index
    %c0_112 = arith.constant 0 : index
    %c32_113 = arith.constant 32 : index
    %492 = vector.load %arg10[%c1_111, %c0_112, %c32_113] : memref<8x2x64xf32, #tpu.memory_space<vmem>>, vector<1x2x32xf32>
    %493 = vector.shape_cast %492 : vector<1x2x32xf32> to vector<2x32xf32>
    %494 = vector.shape_cast %488 : vector<2x32xf32> to vector<1x2x32xf32>
    tpu.vector_store %arg10[%c1_111, %c0_112, %c32_113], %494 {strides = array<i32>} : memref<8x2x64xf32, #tpu.memory_space<vmem>>, vector<1x2x32xf32>,
    %495 = vector.extract_strided_slice %5 {offsets = [14, 0], sizes = [2, 96], strides = [1, 1]} : vector<16x96xf32> to vector<2x96xf32>
    %496 = arith.truncf %457 : vector<2x32xf32> to vector<2x32xbf16>
    %cst_114 = arith.constant dense<0.000000e+00> : vector<2x96xf32>
    %497 = tpu.matmul %496, %11, %cst_114 {dimension_numbers = #tpu.dot_dimension_numbers<[1], [0], [0], [1], [0, 0, 1, 1], [], []>} : vector<2x32xbf16>, vector<32x96xbf16>, vector<2x96xf32> -> vector<2x96xf32>
    %498 = vector.extract_strided_slice %495 {offsets = [0, 0], sizes = [2, 32], strides = [1, 1]} : vector<2x96xf32> to vector<2x32xf32>
    %499 = vector.extract_strided_slice %497 {offsets = [0, 0], sizes = [2, 32], strides = [1, 1]} : vector<2x96xf32> to vector<2x32xf32>
    %500 = arith.addf %498, %499 : vector<2x32xf32>
    %501 = arith.negf %500 : vector<2x32xf32>
    %502 = math.exp %501 : vector<2x32xf32>
    %cst_115 = arith.constant 1.000000e+00 : f32
    %503 = vector.broadcast %cst_115 : f32 to vector<2x32xf32>
    %504 = arith.addf %503, %502 : vector<2x32xf32>
    %505 = arith.divf %503, %504 : vector<2x32xf32>
    %506 = vector.extract_strided_slice %495 {offsets = [0, 32], sizes = [2, 32], strides = [1, 1]} : vector<2x96xf32> to vector<2x32xf32>
    %507 = vector.extract_strided_slice %497 {offsets = [0, 32], sizes = [2, 32], strides = [1, 1]} : vector<2x96xf32> to vector<2x32xf32>
    %508 = arith.addf %506, %507 : vector<2x32xf32>
    %509 = arith.negf %508 : vector<2x32xf32>
    %510 = math.exp %509 : vector<2x32xf32>
    %cst_116 = arith.constant 1.000000e+00 : f32
    %511 = vector.broadcast %cst_116 : f32 to vector<2x32xf32>
    %512 = arith.addf %511, %510 : vector<2x32xf32>
    %513 = arith.divf %511, %512 : vector<2x32xf32>
    %514 = vector.extract_strided_slice %495 {offsets = [0, 64], sizes = [2, 32], strides = [1, 1]} : vector<2x96xf32> to vector<2x32xf32>
    %515 = vector.extract_strided_slice %497 {offsets = [0, 64], sizes = [2, 32], strides = [1, 1]} : vector<2x96xf32> to vector<2x32xf32>
    %516 = vector.broadcast %13 : vector<1x32xf32> to vector<2x32xf32>
    %517 = arith.addf %515, %516 : vector<2x32xf32>
    %518 = arith.mulf %505, %517 : vector<2x32xf32>
    %519 = arith.addf %514, %518 : vector<2x32xf32>
    %520 = math.tanh %519 : vector<2x32xf32>
    %cst_117 = arith.constant 1.000000e+00 : f32
    %521 = vector.broadcast %cst_117 : f32 to vector<2x32xf32>
    %522 = arith.subf %521, %513 : vector<2x32xf32>
    %523 = arith.mulf %522, %520 : vector<2x32xf32>
    %524 = arith.mulf %513, %457 : vector<2x32xf32>
    %525 = arith.addf %523, %524 : vector<2x32xf32>
    %526 = vector.extract_strided_slice %10 {offsets = [0, 0], sizes = [2, 96], strides = [1, 1]} : vector<16x96xf32> to vector<2x96xf32>
    %527 = arith.truncf %488 : vector<2x32xf32> to vector<2x32xbf16>
    %cst_118 = arith.constant dense<0.000000e+00> : vector<2x96xf32>
    %528 = tpu.matmul %527, %12, %cst_118 {dimension_numbers = #tpu.dot_dimension_numbers<[1], [0], [0], [1], [0, 0, 1, 1], [], []>} : vector<2x32xbf16>, vector<32x96xbf16>, vector<2x96xf32> -> vector<2x96xf32>
    %529 = vector.extract_strided_slice %526 {offsets = [0, 0], sizes = [2, 32], strides = [1, 1]} : vector<2x96xf32> to vector<2x32xf32>
    %530 = vector.extract_strided_slice %528 {offsets = [0, 0], sizes = [2, 32], strides = [1, 1]} : vector<2x96xf32> to vector<2x32xf32>
    %531 = arith.addf %529, %530 : vector<2x32xf32>
    %532 = arith.negf %531 : vector<2x32xf32>
    %533 = math.exp %532 : vector<2x32xf32>
    %cst_119 = arith.constant 1.000000e+00 : f32
    %534 = vector.broadcast %cst_119 : f32 to vector<2x32xf32>
    %535 = arith.addf %534, %533 : vector<2x32xf32>
    %536 = arith.divf %534, %535 : vector<2x32xf32>
    %537 = vector.extract_strided_slice %526 {offsets = [0, 32], sizes = [2, 32], strides = [1, 1]} : vector<2x96xf32> to vector<2x32xf32>
    %538 = vector.extract_strided_slice %528 {offsets = [0, 32], sizes = [2, 32], strides = [1, 1]} : vector<2x96xf32> to vector<2x32xf32>
    %539 = arith.addf %537, %538 : vector<2x32xf32>
    %540 = arith.negf %539 : vector<2x32xf32>
    %541 = math.exp %540 : vector<2x32xf32>
    %cst_120 = arith.constant 1.000000e+00 : f32
    %542 = vector.broadcast %cst_120 : f32 to vector<2x32xf32>
    %543 = arith.addf %542, %541 : vector<2x32xf32>
    %544 = arith.divf %542, %543 : vector<2x32xf32>
    %545 = vector.extract_strided_slice %526 {offsets = [0, 64], sizes = [2, 32], strides = [1, 1]} : vector<2x96xf32> to vector<2x32xf32>
    %546 = vector.extract_strided_slice %528 {offsets = [0, 64], sizes = [2, 32], strides = [1, 1]} : vector<2x96xf32> to vector<2x32xf32>
    %547 = vector.broadcast %14 : vector<1x32xf32> to vector<2x32xf32>
    %548 = arith.addf %546, %547 : vector<2x32xf32>
    %549 = arith.mulf %536, %548 : vector<2x32xf32>
    %550 = arith.addf %545, %549 : vector<2x32xf32>
    %551 = math.tanh %550 : vector<2x32xf32>
    %cst_121 = arith.constant 1.000000e+00 : f32
    %552 = vector.broadcast %cst_121 : f32 to vector<2x32xf32>
    %553 = arith.subf %552, %544 : vector<2x32xf32>
    %554 = arith.mulf %553, %551 : vector<2x32xf32>
    %555 = arith.mulf %544, %488 : vector<2x32xf32>
    %556 = arith.addf %554, %555 : vector<2x32xf32>
    %c7_122 = arith.constant 7 : index
    %c0_123 = arith.constant 0 : index
    %c0_124 = arith.constant 0 : index
    %557 = vector.load %arg10[%c7_122, %c0_123, %c0_124] : memref<8x2x64xf32, #tpu.memory_space<vmem>>, vector<1x2x32xf32>
    %558 = vector.shape_cast %557 : vector<1x2x32xf32> to vector<2x32xf32>
    %559 = vector.shape_cast %525 : vector<2x32xf32> to vector<1x2x32xf32>
    tpu.vector_store %arg10[%c7_122, %c0_123, %c0_124], %559 {strides = array<i32>} : memref<8x2x64xf32, #tpu.memory_space<vmem>>, vector<1x2x32xf32>,
    %c0_125 = arith.constant 0 : index
    %c0_126 = arith.constant 0 : index
    %c32_127 = arith.constant 32 : index
    %560 = vector.load %arg10[%c0_125, %c0_126, %c32_127] : memref<8x2x64xf32, #tpu.memory_space<vmem>>, vector<1x2x32xf32>
    %561 = vector.shape_cast %560 : vector<1x2x32xf32> to vector<2x32xf32>
    %562 = vector.shape_cast %556 : vector<2x32xf32> to vector<1x2x32xf32>
    tpu.vector_store %arg10[%c0_125, %c0_126, %c32_127], %562 {strides = array<i32>} : memref<8x2x64xf32, #tpu.memory_space<vmem>>, vector<1x2x32xf32>,
    %c0_128 = arith.constant 0 : index
    %c0_129 = arith.constant 0 : index
    %c0_130 = arith.constant 0 : index
    %563 = vector.load %arg11[%c0_128, %c0_129, %c0_130] : memref<2x2x32xf32, #tpu.memory_space<vmem>>, vector<1x2x32xf32>
    %564 = vector.shape_cast %563 : vector<1x2x32xf32> to vector<2x32xf32>
    %565 = vector.shape_cast %525 : vector<2x32xf32> to vector<1x2x32xf32>
    tpu.vector_store %arg11[%c0_128, %c0_129, %c0_130], %565 {strides = array<i32>} : memref<2x2x32xf32, #tpu.memory_space<vmem>>, vector<1x2x32xf32>,
    %c1_131 = arith.constant 1 : index
    %c0_132 = arith.constant 0 : index
    %c0_133 = arith.constant 0 : index
    %566 = vector.load %arg11[%c1_131, %c0_132, %c0_133] : memref<2x2x32xf32, #tpu.memory_space<vmem>>, vector<1x2x32xf32>
    %567 = vector.shape_cast %566 : vector<1x2x32xf32> to vector<2x32xf32>
    %568 = vector.shape_cast %556 : vector<2x32xf32> to vector<1x2x32xf32>
    tpu.vector_store %arg11[%c1_131, %c0_132, %c0_133], %568 {strides = array<i32>} : memref<2x2x32xf32, #tpu.memory_space<vmem>>, vector<1x2x32xf32>,
    return
  }
}

</mosaic_0001>

<llo_original>
// kernel: text_encoder_forward.1
$region0: #{text_encoder_forward.1}
  #allocation0 [shape = 'u32[]', space=smem, size = 0x4, offset = 0x4, fixed_abs, tag = 'smem constant byte address 0x4 - core index']
  #allocation1 [shape = 'u32[144,128]{1,0:T(1,128)}', space=vmem, size = 0x12000, scoped, tag = 'internal scratch']
  %s0 = inlined_call_operand.vmem [shape: f32[16,16], index: 0, kind: input, shape index: {}]
  %s1 = inlined_call_operand.vmem [shape: f32[2,2,32], index: 1, kind: input, shape index: {}]
  %s2 = inlined_call_operand.vmem [shape: f32[16,96], index: 2, kind: input, shape index: {}]
  %s3 = inlined_call_operand.vmem [shape: bf16[32,96], index: 3, kind: input, shape index: {}]
  %s4 = inlined_call_operand.vmem [shape: f32[1,96], index: 4, kind: input, shape index: {}]
  %s5 = inlined_call_operand.vmem [shape: f32[1,32], index: 5, kind: input, shape index: {}]
  %s6 = inlined_call_operand.vmem [shape: f32[16,96], index: 6, kind: input, shape index: {}]
  %s7 = inlined_call_operand.vmem [shape: bf16[32,96], index: 7, kind: input, shape index: {}]
  %s8 = inlined_call_operand.vmem [shape: f32[1,96], index: 8, kind: input, shape index: {}]
  %s9 = inlined_call_operand.vmem [shape: f32[1,32], index: 9, kind: input, shape index: {}]
  %s10 = inlined_call_operand.vmem [shape: f32[8,2,64], index: 10, kind: output, shape index: {0}]
  %s11 = inlined_call_operand.hbm [shape: f32[2,2,32], index: 11, kind: output, shape index: {1}]
  %12 = xla_tuple %s10, %s11
  %s13 = sld [smem:[#allocation0]]
  $region58: #{text_encoder_forward.1} parent=0
    _
  %s15 = ssub.s32 1, %s13
  %s16 = scalar_select 0, %s15, %s13
  $region1: #{text_encoder_forward.1} parent=0
    #allocation2 [shape = 'u8[2048]{0}', space=vmem, size = 0x800, scoped, tag = 'output window, operand 1, single buffered']
    #allocation3 [shape = 's32[1]{0}', space=sflag, size = 0x4, scoped, tag = 'scoped memory for text_encoder_forward.1']
    %17 = vsyncpa [#allocation3], 0
    // Predicated region
    $region2: #{text_encoder_forward.1} parent=1 // pred_check
      _
    $region3: #{text_encoder_forward.1} parent=1 // pred_check_branch
      %19 = sbr.rel (0) target = $region5
    $region4: #{text_encoder_forward.1} parent=1 // pred_region
      _
    $region5: #{text_encoder_forward.1} parent=1 // pred_fallthru
      _
    // Predicated region
    $region6: #{text_encoder_forward.1} parent=1 // pred_check
      _
    $region7: #{text_encoder_forward.1} parent=1 // pred_check_branch
      %21 = sbr.rel (0) target = $region9
    $region8: #{text_encoder_forward.1} parent=1 // pred_region
      _
    $region9: #{text_encoder_forward.1} parent=1 // pred_fallthru
      _
    // Predicated region
    $region10: #{text_encoder_forward.1} parent=1 // pred_check
      _
    $region11: #{text_encoder_forward.1} parent=1 // pred_check_branch
      %23 = sbr.rel (0) target = $region13
    $region12: #{text_encoder_forward.1} parent=1 // pred_region
      _
    $region13: #{text_encoder_forward.1} parent=1 // pred_fallthru
      _
    // Predicated region
    $region14: #{text_encoder_forward.1} parent=1 // pred_check
      _
    $region15: #{text_encoder_forward.1} parent=1 // pred_check_branch
      %25 = sbr.rel (0) target = $region17
    $region16: #{text_encoder_forward.1} parent=1 // pred_region
      _
    $region17: #{text_encoder_forward.1} parent=1 // pred_fallthru
      _
    // Predicated region
    $region18: #{text_encoder_forward.1} parent=1 // pred_check
      _
    $region19: #{text_encoder_forward.1} parent=1 // pred_check_branch
      %27 = sbr.rel (0) target = $region21
    $region20: #{text_encoder_forward.1} parent=1 // pred_region
      _
    $region21: #{text_encoder_forward.1} parent=1 // pred_fallthru
      _
    // Predicated region
    $region22: #{text_encoder_forward.1} parent=1 // pred_check
      _
    $region23: #{text_encoder_forward.1} parent=1 // pred_check_branch
      %29 = sbr.rel (0) target = $region25
    $region24: #{text_encoder_forward.1} parent=1 // pred_region
      _
    $region25: #{text_encoder_forward.1} parent=1 // pred_fallthru
      _
    // Predicated region
    $region26: #{text_encoder_forward.1} parent=1 // pred_check
      _
    $region27: #{text_encoder_forward.1} parent=1 // pred_check_branch
      %31 = sbr.rel (0) target = $region29
    $region28: #{text_encoder_forward.1} parent=1 // pred_region
      _
    $region29: #{text_encoder_forward.1} parent=1 // pred_fallthru
      _
    // Predicated region
    $region30: #{text_encoder_forward.1} parent=1 // pred_check
      _
    $region31: #{text_encoder_forward.1} parent=1 // pred_check_branch
      %33 = sbr.rel (0) target = $region33
    $region32: #{text_encoder_forward.1} parent=1 // pred_region
      _
    $region33: #{text_encoder_forward.1} parent=1 // pred_fallthru
      _
    // Predicated region
    $region34: #{text_encoder_forward.1} parent=1 // pred_check
      _
    $region35: #{text_encoder_forward.1} parent=1 // pred_check_branch
      %35 = sbr.rel (0) target = $region37
    $region36: #{text_encoder_forward.1} parent=1 // pred_region
      _
    $region37: #{text_encoder_forward.1} parent=1 // pred_fallthru
      _
    // Predicated region
    $region38: #{text_encoder_forward.1} parent=1 // pred_check
      _
    $region39: #{text_encoder_forward.1} parent=1 // pred_check_branch
      %37 = sbr.rel (0) target = $region41
    $region40: #{text_encoder_forward.1} parent=1 // pred_region
      _
    $region41: #{text_encoder_forward.1} parent=1 // pred_fallthru
      _
    %v39 = vld [vmem:[%s0] sm:$0xff]
    %v40 = vld [vmem:[%s0 + $0x8] sm:$0xff]
    %v41 = vld [vmem:[%s2] sm:$0xff]
    %v42 = vld [vmem:[%s2 + $0x8] sm:$0xff]
    %v43 = vld [vmem:[%s4] sm:$0x1]
    %v45 = vlaneseq
    %v46 = vshrl.u32 %v45, 7
    %v47 = vsub.s32 0, %v46
    %v48 = vrot.slane %v43, %v47
    %vm50 = vcmask 130048
    %v52 = vsel %vm50, %v39, 0
    %v55 = vsel %vm50, %v40, 0
    %57 = vmatprep.subr.mxu0 0.0
    %58 = vmatpush1.msra.mxu0 0.0
    %59 = vmatprep.subr.mxu0 0.0
    %60 = vmatpush1.msra.mxu0 0.0
    %61 = vmatprep.subr.mxu0 0.0
    %62 = vmatpush1.msra.mxu0 0.0
    %63 = vmatprep.subr.mxu0 0.0
    %64 = vmatpush1.msra.mxu0 0.0
    %65 = vmatprep.subr.mxu0 0.0
    %66 = vmatpush1.msra.mxu0 0.0
    %67 = vmatprep.subr.mxu0 0.0
    %68 = vmatpush1.msra.mxu0 0.0
    %69 = vmatprep.subr.mxu0 0.0
    %70 = vmatpush1.msra.mxu0 0.0
    %71 = vmatprep.subr.mxu0 0.0
    %72 = vmatpush1.msra.mxu0 0.0
    %73 = vmatprep.subr.mxu0 0.0
    %74 = vmatpush1.msra.mxu0 0.0
    %75 = vmatprep.subr.mxu0 0.0
    %76 = vmatpush1.msra.mxu0 0.0
    %77 = vmatprep.subr.mxu0 0.0
    %78 = vmatpush1.msra.mxu0 0.0
    %79 = vmatprep.subr.mxu0 0.0
    %80 = vmatpush1.msra.mxu0 0.0
    %81 = vmatprep.subr.mxu0 0.0
    %82 = vmatpush1.msra.mxu0 0.0
    %83 = vmatprep.subr.mxu0 0.0
    %84 = vmatpush1.msra.mxu0 0.0
    %85 = vmatprep.subr.mxu0 0.0
    %86 = vmatpush1.msra.mxu0 %v42
    %87 = vmatprep.subr.mxu0 0.0
    %88 = vmatpush1.msra.mxu0 %v41
    %89 = vmatprep.subr.mxu0 0.0
    %90 = vmatpush2.msra.mxu0 0.0
    %91 = vmatprep.subr.mxu0 0.0
    %92 = vmatpush2.msra.mxu0 0.0
    %93 = vmatprep.subr.mxu0 0.0
    %94 = vmatpush2.msra.mxu0 0.0
    %95 = vmatprep.subr.mxu0 0.0
    %96 = vmatpush2.msra.mxu0 0.0
    %97 = vmatprep.subr.mxu0 0.0
    %98 = vmatpush2.msra.mxu0 0.0
    %99 = vmatprep.subr.mxu0 0.0
    %100 = vmatpush2.msra.mxu0 0.0
    %101 = vmatprep.subr.mxu0 0.0
    %102 = vmatpush2.msra.mxu0 0.0
    %103 = vmatprep.subr.mxu0 0.0
    %104 = vmatpush2.msra.mxu0 0.0
    %105 = vmatprep.subr.mxu0 0.0
    %106 = vmatpush2.msra.mxu0 0.0
    %107 = vmatprep.subr.mxu0 0.0
    %108 = vmatpush2.msra.mxu0 0.0
    %109 = vmatprep.subr.mxu0 0.0
    %110 = vmatpush2.msra.mxu0 0.0
    %111 = vmatprep.subr.mxu0 0.0
    %112 = vmatpush2.msra.mxu0 0.0
    %113 = vmatprep.subr.mxu0 0.0
    %114 = vmatpush2.msra.mxu0 0.0
    %115 = vmatprep.subr.mxu0 0.0
    %116 = vmatpush2.msra.mxu0 0.0
    %117 = vmatprep.subr.mxu0 0.0
    %118 = vmatpush2.msra.mxu0 0.0
    %119 = vmatprep.subr.mxu0 0.0
    %120 = vmatpush2.msra.mxu0 0.0
    %121 = vmatprep.mubr.f32.mxu0 0.0
    %122 = vmatmul.mubr.f32.gmra.mxu0 %v52
    %v123 = vpop.f32.mrf.mxu0
    %v124 = vadd.f32 %v48, %v123
    %v125 = vpop.f32.mrf.mxu0
    %126 = vmatprep.mubr.f32.mxu0 0.0
    %127 = vmatmul.mubr.f32.gmra.mxu0 %v55
    %v128 = vpop.f32.mrf.mxu0
    %v129 = vadd.f32 %v48, %v128
    %v130 = vpop.f32.mrf.mxu0
    %131 = vdwg.mxu0
    %v132 = vld [vmem:[%s6] sm:$0xff]
    %v133 = vld [vmem:[%s6 + $0x8] sm:$0xff]
    %v134 = vld [vmem:[%s8] sm:$0x1]
    %v136 = vlaneseq
    %v137 = vshrl.u32 %v136, 7
    %v138 = vsub.s32 0, %v137
    %v139 = vrot.slane %v134, %v138
    %141 = vmatprep.subr.mxu0 0.0
    %142 = vmatpush1.msra.mxu0 0.0
    %143 = vmatprep.subr.mxu0 0.0
    %144 = vmatpush1.msra.mxu0 0.0
    %145 = vmatprep.subr.mxu0 0.0
    %146 = vmatpush1.msra.mxu0 0.0
    %147 = vmatprep.subr.mxu0 0.0
    %148 = vmatpush1.msra.mxu0 0.0
    %149 = vmatprep.subr.mxu0 0.0
    %150 = vmatpush1.msra.mxu0 0.0
    %151 = vmatprep.subr.mxu0 0.0
    %152 = vmatpush1.msra.mxu0 0.0
    %153 = vmatprep.subr.mxu0 0.0
    %154 = vmatpush1.msra.mxu0 0.0
    %155 = vmatprep.subr.mxu0 0.0
    %156 = vmatpush1.msra.mxu0 0.0
    %157 = vmatprep.subr.mxu0 0.0
    %158 = vmatpush1.msra.mxu0 0.0
    %159 = vmatprep.subr.mxu0 0.0
    %160 = vmatpush1.msra.mxu0 0.0
    %161 = vmatprep.subr.mxu0 0.0
    %162 = vmatpush1.msra.mxu0 0.0
    %163 = vmatprep.subr.mxu0 0.0
    %164 = vmatpush1.msra.mxu0 0.0
    %165 = vmatprep.subr.mxu0 0.0
    %166 = vmatpush1.msra.mxu0 0.0
    %167 = vmatprep.subr.mxu0 0.0
    %168 = vmatpush1.msra.mxu0 0.0
    %169 = vmatprep.subr.mxu0 0.0
    %170 = vmatpush1.msra.mxu0 %v133
    %171 = vmatprep.subr.mxu0 0.0
    %172 = vmatpush1.msra.mxu0 %v132
    %173 = vmatprep.subr.mxu0 0.0
    %174 = vmatpush2.msra.mxu0 0.0
    %175 = vmatprep.subr.mxu0 0.0
    %176 = vmatpush2.msra.mxu0 0.0
    %177 = vmatprep.subr.mxu0 0.0
    %178 = vmatpush2.msra.mxu0 0.0
    %179 = vmatprep.subr.mxu0 0.0
    %180 = vmatpush2.msra.mxu0 0.0
    %181 = vmatprep.subr.mxu0 0.0
    %182 = vmatpush2.msra.mxu0 0.0
    %183 = vmatprep.subr.mxu0 0.0
    %184 = vmatpush2.msra.mxu0 0.0
    %185 = vmatprep.subr.mxu0 0.0
    %186 = vmatpush2.msra.mxu0 0.0
    %187 = vmatprep.subr.mxu0 0.0
    %188 = vmatpush2.msra.mxu0 0.0
    %189 = vmatprep.subr.mxu0 0.0
    %190 = vmatpush2.msra.mxu0 0.0
    %191 = vmatprep.subr.mxu0 0.0
    %192 = vmatpush2.msra.mxu0 0.0
    %193 = vmatprep.subr.mxu0 0.0
    %194 = vmatpush2.msra.mxu0 0.0
    %195 = vmatprep.subr.mxu0 0.0
    %196 = vmatpush2.msra.mxu0 0.0
    %197 = vmatprep.subr.mxu0 0.0
    %198 = vmatpush2.msra.mxu0 0.0
    %199 = vmatprep.subr.mxu0 0.0
    %200 = vmatpush2.msra.mxu0 0.0
    %201 = vmatprep.subr.mxu0 0.0
    %202 = vmatpush2.msra.mxu0 0.0
    %203 = vmatprep.subr.mxu0 0.0
    %204 = vmatpush2.msra.mxu0 0.0
    %205 = vmatprep.mubr.f32.mxu0 0.0
    %206 = vmatmul.mubr.f32.gmra.mxu0 %v52
    %v207 = vpop.f32.mrf.mxu0
    %v208 = vadd.f32 %v139, %v207
    %v209 = vpop.f32.mrf.mxu0
    %210 = vmatprep.mubr.f32.mxu0 0.0
    %211 = vmatmul.mubr.f32.gmra.mxu0 %v55
    %v212 = vpop.f32.mrf.mxu0
    %v213 = vadd.f32 %v139, %v212
    %v214 = vpop.f32.mrf.mxu0
    %215 = vdwg.mxu0
    %v216 = vld [vmem:[%s3] sm:$0xf]
    %v217 = vld [vmem:[%s3 + $0x4] sm:$0xf]
    %v218 = vld [vmem:[%s3 + $0x8] sm:$0xf]
    %v219 = vld [vmem:[%s3 + $0xc] sm:$0xf]
    %v220 = vld [vmem:[%s7] sm:$0xf]
    %v221 = vld [vmem:[%s7 + $0x4] sm:$0xf]
    %v222 = vld [vmem:[%s7 + $0x8] sm:$0xf]
    %v223 = vld [vmem:[%s7 + $0xc] sm:$0xf]
    %v224 = vld [vmem:[%s5] sm:$0x1]
    %v225 = vld [vmem:[%s9] sm:$0x1]
    %v226 = vld [vmem:[%s1] sm:$0x3]
    %s227 = scalar_lea.vmem %s1, 2
    %v228 = vld [vmem:[%s227] sm:$0x3]
    %v229 = vpack.c.bf16 %v226, %v226
    %v234 = vunpack.c.l.b16 %v216
    %v235 = vunpack.c.l.b16 %v217
    %v236 = vunpack.c.l.b16 %v218
    %v237 = vunpack.c.l.b16 %v219
    %v238 = vpack.c.b16 %v235, %v234
    %v239 = vpack.c.b16 %v237, %v236
    %vm242 = vcmask 261120
    %v244 = vsel %vm242, %v229, 0
    %246 = vmatprep.subr.bf16.mxu0 0
    %247 = vmatpush1.bf16.msra.mxu0 0
    %248 = vmatprep.subr.bf16.mxu0 0
    %249 = vmatpush1.bf16.msra.mxu0 0
    %250 = vmatprep.subr.bf16.mxu0 0
    %251 = vmatpush1.bf16.msra.mxu0 0
    %252 = vmatprep.subr.bf16.mxu0 0
    %253 = vmatpush1.bf16.msra.mxu0 0
    %254 = vmatprep.subr.bf16.mxu0 0
    %255 = vmatpush1.bf16.msra.mxu0 0
    %256 = vmatprep.subr.bf16.mxu0 0
    %257 = vmatpush1.bf16.msra.mxu0 0
    %258 = vmatprep.subr.bf16.mxu0 0
    %259 = vmatpush1.bf16.msra.mxu0 %v239
    %260 = vmatprep.subr.bf16.mxu0 0
    %261 = vmatpush1.bf16.msra.mxu0 %v238
    %262 = vmatprep.subr.bf16.mxu0 0
    %263 = vmatpush2.bf16.msra.mxu0 0
    %264 = vmatprep.subr.bf16.mxu0 0
    %265 = vmatpush2.bf16.msra.mxu0 0
    %266 = vmatprep.subr.bf16.mxu0 0
    %267 = vmatpush2.bf16.msra.mxu0 0
    %268 = vmatprep.subr.bf16.mxu0 0
    %269 = vmatpush2.bf16.msra.mxu0 0
    %270 = vmatprep.subr.bf16.mxu0 0
    %271 = vmatpush2.bf16.msra.mxu0 0
    %272 = vmatprep.subr.bf16.mxu0 0
    %273 = vmatpush2.bf16.msra.mxu0 0
    %274 = vmatprep.subr.bf16.mxu0 0
    %275 = vmatpush2.bf16.msra.mxu0 0
    %276 = vmatprep.subr.bf16.mxu0 0
    %277 = vmatpush2.bf16.msra.mxu0 0
    %278 = vmatprep.mubr.bf16.mxu0 0
    %279 = vmatmul.mubr.bf16.gmra.mxu0 %v244
    %v280 = vpop.f32.mrf.mxu0
    %v281 = vadd.f32 0.0, %v280
    %v282 = vpop.f32.mrf.mxu0
    %v283 = vpop.f32.mrf.mxu0
    %v284 = vpop.f32.mrf.mxu0
    %285 = vdwg.mxu0
    %v286 = vadd.f32 %v124, %v281
    %v287 = vxor.u32 %v286, 2147483648
    %v288 = vmul.f32 %v287, 1.442695
    %v289 = vpow.pop %v288
    %v290 = vadd.f32 %v289, 1.0
    %v291 = vrcp.pop %v290
    %v292 = vmul.f32 1.0, %v291
    %v294 = vlaneseq
    %v295 = vshrl.u32 %v294, 7
    %v296 = vsub.s32 0, %v295
    %v297 = vrot.slane %v224, %v296
    %298 = vrot.lane.b32.xlu0 %v297, 64
    %v299 = vpop.permute.xlu0 %298
    %v301 = vadd.f32 %v281, %v299
    %303 = vrot.lane.b32.xlu0 %v301, 64
    %v304 = vpop.permute.xlu0 %303
    %v306 = vmul.f32 %v292, %v304
    %308 = vrot.lane.b32.xlu0 %v306, 64
    %v309 = vpop.permute.xlu0 %308
    %v311 = vadd.f32 %v124, %v309
    %v312 = vtanh.pop %v311
    %v313 = vsub.f32 1.0, %v292
    %315 = vrot.lane.b32.xlu0 %v312, 96
    %v316 = vpop.permute.xlu0 %315
    %v318 = vmul.f32 %v313, %v316
    %320 = vrot.lane.b32.xlu0 %v226, 32
    %v321 = vpop.permute.xlu0 %320
    %v323 = vmul.f32 %v292, %v321
    %v324 = vadd.f32 %v318, %v323
    %v325 = vpack.c.bf16 %v228, %v228
    %v330 = vunpack.c.l.b16 %v220
    %v331 = vunpack.c.l.b16 %v221
    %v332 = vunpack.c.l.b16 %v222
    %v333 = vunpack.c.l.b16 %v223
    %v334 = vpack.c.b16 %v331, %v330
    %v335 = vpack.c.b16 %v333, %v332
    %v339 = vsel %vm242, %v325, 0
    %341 = vmatprep.subr.bf16.mxu0 0
    %342 = vmatpush1.bf16.msra.mxu0 0
    %343 = vmatprep.subr.bf16.mxu0 0
    %344 = vmatpush1.bf16.msra.mxu0 0
    %345 = vmatprep.subr.bf16.mxu0 0
    %346 = vmatpush1.bf16.msra.mxu0 0
    %347 = vmatprep.subr.bf16.mxu0 0
    %348 = vmatpush1.bf16.msra.mxu0 0
    %349 = vmatprep.subr.bf16.mxu0 0
    %350 = vmatpush1.bf16.msra.mxu0 0
    %351 = vmatprep.subr.bf16.mxu0 0
    %352 = vmatpush1.bf16.msra.mxu0 0
    %353 = vmatprep.subr.bf16.mxu0 0
    %354 = vmatpush1.bf16.msra.mxu0 %v335
    %355 = vmatprep.subr.bf16.mxu0 0
    %356 = vmatpush1.bf16.msra.mxu0 %v334
    %357 = vmatprep.subr.bf16.mxu0 0
    %358 = vmatpush2.bf16.msra.mxu0 0
    %359 = vmatprep.subr.bf16.mxu0 0
    %360 = vmatpush2.bf16.msra.mxu0 0
    %361 = vmatprep.subr.bf16.mxu0 0
    %362 = vmatpush2.bf16.msra.mxu0 0
    %363 = vmatprep.subr.bf16.mxu0 0
    %364 = vmatpush2.bf16.msra.mxu0 0
    %365 = vmatprep.subr.bf16.mxu0 0
    %366 = vmatpush2.bf16.msra.mxu0 0
    %367 = vmatprep.subr.bf16.mxu0 0
    %368 = vmatpush2.bf16.msra.mxu0 0
    %369 = vmatprep.subr.bf16.mxu0 0
    %370 = vmatpush2.bf16.msra.mxu0 0
    %371 = vmatprep.subr.bf16.mxu0 0
    %372 = vmatpush2.bf16.msra.mxu0 0
    %373 = vmatprep.mubr.bf16.mxu0 0
    %374 = vmatmul.mubr.bf16.gmra.mxu0 %v339
    %v375 = vpop.f32.mrf.mxu0
    %v376 = vadd.f32 0.0, %v375
    %v377 = vpop.f32.mrf.mxu0
    %v378 = vpop.f32.mrf.mxu0
    %v379 = vpop.f32.mrf.mxu0
    %380 = vdwg.mxu0
    %v382 = vrot.slane %v376, 2
    %v384 = vadd.f32 %v213, %v382
    %v385 = vxor.u32 %v384, 2147483648
    %v386 = vmul.f32 %v385, 1.442695
    %v387 = vpow.pop %v386
    %v388 = vadd.f32 %v387, 1.0
    %v389 = vrcp.pop %v388
    %v390 = vmul.f32 1.0, %v389
    %v392 = vlaneseq
    %v393 = vshrl.u32 %v392, 7
    %v394 = vsub.s32 0, %v393
    %v395 = vrot.slane %v225, %v394
    %396 = vrot.lane.b32.xlu0 %v395, 64
    %v397 = vpop.permute.xlu0 %396
    %v399 = vadd.f32 %v376, %v397
    %v401 = vrot.slane %v399, 2
    %402 = vrot.lane.b32.xlu0 %v401, 64
    %v403 = vpop.permute.xlu0 %402
    %v405 = vmul.f32 %v390, %v403
    %407 = vrot.lane.b32.xlu0 %v405, 64
    %v408 = vpop.permute.xlu0 %407
    %v410 = vadd.f32 %v213, %v408
    %v411 = vtanh.pop %v410
    %v412 = vsub.f32 1.0, %v390
    %414 = vrot.lane.b32.xlu0 %v411, 96
    %v415 = vpop.permute.xlu0 %414
    %v417 = vmul.f32 %v412, %v415
    %v419 = vrot.slane %v228, 2
    %420 = vrot.lane.b32.xlu0 %v419, 32
    %v421 = vpop.permute.xlu0 %420
    %v423 = vmul.f32 %v390, %v421
    %v424 = vadd.f32 %v417, %v423
    %426 = vrot.lane.b32.xlu0 %v324, 96
    %v427 = vpop.permute.xlu0 %426
    %vm429 = vcmask 254976
    %430 = vst.msk [vmem:[%s10] sm:$0x3] %vm429, %v427
    %s431 = scalar_lea.vmem %s10, 14
    %vm432 = vcmask 523526
    %433 = vst.msk [vmem:[%s431 - $0x6] sm:$0xc0] %vm432, %v424
    %v434 = vpack.c.bf16 %v324, %v324
    %436 = vrot.lane.b32.xlu0 %v434, 96
    %v437 = vpop.permute.xlu0 %436
    %v439 = vsel %vm242, %v437, 0
    %441 = vmatprep.subr.bf16.mxu0 0
    %442 = vmatpush1.bf16.msra.mxu0 0
    %443 = vmatprep.subr.bf16.mxu0 0
    %444 = vmatpush1.bf16.msra.mxu0 0
    %445 = vmatprep.subr.bf16.mxu0 0
    %446 = vmatpush1.bf16.msra.mxu0 0
    %447 = vmatprep.subr.bf16.mxu0 0
    %448 = vmatpush1.bf16.msra.mxu0 0
    %449 = vmatprep.subr.bf16.mxu0 0
    %450 = vmatpush1.bf16.msra.mxu0 0
    %451 = vmatprep.subr.bf16.mxu0 0
    %452 = vmatpush1.bf16.msra.mxu0 0
    %453 = vmatprep.subr.bf16.mxu0 0
    %454 = vmatpush1.bf16.msra.mxu0 %v239
    %455 = vmatprep.subr.bf16.mxu0 0
    %456 = vmatpush1.bf16.msra.mxu0 %v238
    %457 = vmatprep.subr.bf16.mxu0 0
    %458 = vmatpush2.bf16.msra.mxu0 0
    %459 = vmatprep.subr.bf16.mxu0 0
    %460 = vmatpush2.bf16.msra.mxu0 0
    %461 = vmatprep.subr.bf16.mxu0 0
    %462 = vmatpush2.bf16.msra.mxu0 0
    %463 = vmatprep.subr.bf16.mxu0 0
    %464 = vmatpush2.bf16.msra.mxu0 0
    %465 = vmatprep.subr.bf16.mxu0 0
    %466 = vmatpush2.bf16.msra.mxu0 0
    %467 = vmatprep.subr.bf16.mxu0 0
    %468 = vmatpush2.bf16.msra.mxu0 0
    %469 = vmatprep.subr.bf16.mxu0 0
    %470 = vmatpush2.bf16.msra.mxu0 0
    %471 = vmatprep.subr.bf16.mxu0 0
    %472 = vmatpush2.bf16.msra.mxu0 0
    %473 = vmatprep.mubr.bf16.mxu0 0
    %474 = vmatmul.mubr.bf16.gmra.mxu0 %v439
    %v475 = vpop.f32.mrf.mxu0
    %v476 = vadd.f32 0.0, %v475
    %v477 = vpop.f32.mrf.mxu0
    %v478 = vpop.f32.mrf.mxu0
    %v479 = vpop.f32.mrf.mxu0
    %480 = vdwg.mxu0
    %v482 = vrot.slane %v476, 6
    %v484 = vadd.f32 %v124, %v482
    %v485 = vxor.u32 %v484, 2147483648
    %v486 = vmul.f32 %v485, 1.442695
    %v487 = vpow.pop %v486
    %v488 = vadd.f32 %v487, 1.0
    %v489 = vrcp.pop %v488
    %v490 = vmul.f32 1.0, %v489
    %v491 = vadd.f32 %v476, %v299
    %v493 = vrot.slane %v491, 6
    %494 = vrot.lane.b32.xlu0 %v493, 64
    %v495 = vpop.permute.xlu0 %494
    %v497 = vmul.f32 %v490, %v495
    %499 = vrot.lane.b32.xlu0 %v497, 64
    %v500 = vpop.permute.xlu0 %499
    %v502 = vadd.f32 %v124, %v500
    %v503 = vtanh.pop %v502
    %v504 = vsub.f32 1.0, %v490
    %506 = vrot.lane.b32.xlu0 %v503, 96
    %v507 = vpop.permute.xlu0 %506
    %v509 = vmul.f32 %v504, %v507
    %v510 = vrot.slane %v324, 6
    %v512 = vmul.f32 %v490, %v510
    %v513 = vadd.f32 %v509, %v512
    %v514 = vpack.c.bf16 %v424, %v424
    %v516 = vrot.slane %v514, 3
    %517 = vrot.lane.b32.xlu0 %v516, 96
    %v518 = vpop.permute.xlu0 %517
    %v520 = vsel %vm242, %v518, 0
    %522 = vmatprep.subr.bf16.mxu0 0
    %523 = vmatpush1.bf16.msra.mxu0 0
    %524 = vmatprep.subr.bf16.mxu0 0
    %525 = vmatpush1.bf16.msra.mxu0 0
    %526 = vmatprep.subr.bf16.mxu0 0
    %527 = vmatpush1.bf16.msra.mxu0 0
    %528 = vmatprep.subr.bf16.mxu0 0
    %529 = vmatpush1.bf16.msra.mxu0 0
    %530 = vmatprep.subr.bf16.mxu0 0
    %531 = vmatpush1.bf16.msra.mxu0 0
    %532 = vmatprep.subr.bf16.mxu0 0
    %533 = vmatpush1.bf16.msra.mxu0 0
    %534 = vmatprep.subr.bf16.mxu0 0
    %535 = vmatpush1.bf16.msra.mxu0 %v335
    %536 = vmatprep.subr.bf16.mxu0 0
    %537 = vmatpush1.bf16.msra.mxu0 %v334
    %538 = vmatprep.subr.bf16.mxu0 0
    %539 = vmatpush2.bf16.msra.mxu0 0
    %540 = vmatprep.subr.bf16.mxu0 0
    %541 = vmatpush2.bf16.msra.mxu0 0
    %542 = vmatprep.subr.bf16.mxu0 0
    %543 = vmatpush2.bf16.msra.mxu0 0
    %544 = vmatprep.subr.bf16.mxu0 0
    %545 = vmatpush2.bf16.msra.mxu0 0
    %546 = vmatprep.subr.bf16.mxu0 0
    %547 = vmatpush2.bf16.msra.mxu0 0
    %548 = vmatprep.subr.bf16.mxu0 0
    %549 = vmatpush2.bf16.msra.mxu0 0
    %550 = vmatprep.subr.bf16.mxu0 0
    %551 = vmatpush2.bf16.msra.mxu0 0
    %552 = vmatprep.subr.bf16.mxu0 0
    %553 = vmatpush2.bf16.msra.mxu0 0
    %554 = vmatprep.mubr.bf16.mxu0 0
    %555 = vmatmul.mubr.bf16.gmra.mxu0 %v520
    %v556 = vpop.f32.mrf.mxu0
    %v557 = vadd.f32 0.0, %v556
    %v558 = vpop.f32.mrf.mxu0
    %v559 = vpop.f32.mrf.mxu0
    %v560 = vpop.f32.mrf.mxu0
    %561 = vdwg.mxu0
    %v563 = vrot.slane %v557, 4
    %v565 = vadd.f32 %v213, %v563
    %v566 = vxor.u32 %v565, 2147483648
    %v567 = vmul.f32 %v566, 1.442695
    %v568 = vpow.pop %v567
    %v569 = vadd.f32 %v568, 1.0
    %v570 = vrcp.pop %v569
    %v571 = vmul.f32 1.0, %v570
    %v572 = vadd.f32 %v557, %v397
    %v574 = vrot.slane %v572, 4
    %575 = vrot.lane.b32.xlu0 %v574, 64
    %v576 = vpop.permute.xlu0 %575
    %v578 = vmul.f32 %v571, %v576
    %580 = vrot.lane.b32.xlu0 %v578, 64
    %v581 = vpop.permute.xlu0 %580
    %v583 = vadd.f32 %v213, %v581
    %v584 = vtanh.pop %v583
    %v585 = vsub.f32 1.0, %v571
    %587 = vrot.lane.b32.xlu0 %v584, 96
    %v588 = vpop.permute.xlu0 %587
    %v590 = vmul.f32 %v585, %v588
    %v592 = vrot.slane %v424, 2
    %v594 = vmul.f32 %v571, %v592
    %v595 = vadd.f32 %v590, %v594
    %597 = vrot.lane.b32.xlu0 %v513, 96
    %v598 = vpop.permute.xlu0 %597
    %s600 = scalar_lea.vmem %s10, 2
    %vm601 = vcmask 257026
    %602 = vst.msk [vmem:[%s600 - $0x2] sm:$0xc] %vm601, %v598
    %s603 = scalar_lea.vmem %s10, 12
    %vm604 = vcmask 521476
    %605 = vst.msk [vmem:[%s603 - $0x4] sm:$0x30] %vm604, %v595
    %v606 = vpack.c.bf16 %v513, %v513
    %v608 = vrot.slane %v606, 1
    %609 = vrot.lane.b32.xlu0 %v608, 96
    %v610 = vpop.permute.xlu0 %609
    %v612 = vsel %vm242, %v610, 0
    %614 = vmatprep.subr.bf16.mxu0 0
    %615 = vmatpush1.bf16.msra.mxu0 0
    %616 = vmatprep.subr.bf16.mxu0 0
    %617 = vmatpush1.bf16.msra.mxu0 0
    %618 = vmatprep.subr.bf16.mxu0 0
    %619 = vmatpush1.bf16.msra.mxu0 0
    %620 = vmatprep.subr.bf16.mxu0 0
    %621 = vmatpush1.bf16.msra.mxu0 0
    %622 = vmatprep.subr.bf16.mxu0 0
    %623 = vmatpush1.bf16.msra.mxu0 0
    %624 = vmatprep.subr.bf16.mxu0 0
    %625 = vmatpush1.bf16.msra.mxu0 0
    %626 = vmatprep.subr.bf16.mxu0 0
    %627 = vmatpush1.bf16.msra.mxu0 %v239
    %628 = vmatprep.subr.bf16.mxu0 0
    %629 = vmatpush1.bf16.msra.mxu0 %v238
    %630 = vmatprep.subr.bf16.mxu0 0
    %631 = vmatpush2.bf16.msra.mxu0 0
    %632 = vmatprep.subr.bf16.mxu0 0
    %633 = vmatpush2.bf16.msra.mxu0 0
    %634 = vmatprep.subr.bf16.mxu0 0
    %635 = vmatpush2.bf16.msra.mxu0 0
    %636 = vmatprep.subr.bf16.mxu0 0
    %637 = vmatpush2.bf16.msra.mxu0 0
    %638 = vmatprep.subr.bf16.mxu0 0
    %639 = vmatpush2.bf16.msra.mxu0 0
    %640 = vmatprep.subr.bf16.mxu0 0
    %641 = vmatpush2.bf16.msra.mxu0 0
    %642 = vmatprep.subr.bf16.mxu0 0
    %643 = vmatpush2.bf16.msra.mxu0 0
    %644 = vmatprep.subr.bf16.mxu0 0
    %645 = vmatpush2.bf16.msra.mxu0 0
    %646 = vmatprep.mubr.bf16.mxu0 0
    %647 = vmatmul.mubr.bf16.gmra.mxu0 %v612
    %v648 = vpop.f32.mrf.mxu0
    %v649 = vadd.f32 0.0, %v648
    %v650 = vpop.f32.mrf.mxu0
    %v651 = vpop.f32.mrf.mxu0
    %v652 = vpop.f32.mrf.mxu0
    %653 = vdwg.mxu0
    %v655 = vrot.slane %v649, 4
    %v657 = vadd.f32 %v124, %v655
    %v658 = vxor.u32 %v657, 2147483648
    %v659 = vmul.f32 %v658, 1.442695
    %v660 = vpow.pop %v659
    %v661 = vadd.f32 %v660, 1.0
    %v662 = vrcp.pop %v661
    %v663 = vmul.f32 1.0, %v662
    %v664 = vadd.f32 %v649, %v299
    %v666 = vrot.slane %v664, 4
    %667 = vrot.lane.b32.xlu0 %v666, 64
    %v668 = vpop.permute.xlu0 %667
    %v670 = vmul.f32 %v663, %v668
    %672 = vrot.lane.b32.xlu0 %v670, 64
    %v673 = vpop.permute.xlu0 %672
    %v675 = vadd.f32 %v124, %v673
    %v676 = vtanh.pop %v675
    %v677 = vsub.f32 1.0, %v663
    %679 = vrot.lane.b32.xlu0 %v676, 96
    %v680 = vpop.permute.xlu0 %679
    %v682 = vmul.f32 %v677, %v680
    %v683 = vrot.slane %v513, 6
    %v685 = vmul.f32 %v663, %v683
    %v686 = vadd.f32 %v682, %v685
    %v687 = vpack.c.bf16 %v595, %v595
    %v689 = vrot.slane %v687, 2
    %690 = vrot.lane.b32.xlu0 %v689, 96
    %v691 = vpop.permute.xlu0 %690
    %v693 = vsel %vm242, %v691, 0
    %695 = vmatprep.subr.bf16.mxu0 0
    %696 = vmatpush1.bf16.msra.mxu0 0
    %697 = vmatprep.subr.bf16.mxu0 0
    %698 = vmatpush1.bf16.msra.mxu0 0
    %699 = vmatprep.subr.bf16.mxu0 0
    %700 = vmatpush1.bf16.msra.mxu0 0
    %701 = vmatprep.subr.bf16.mxu0 0
    %702 = vmatpush1.bf16.msra.mxu0 0
    %703 = vmatprep.subr.bf16.mxu0 0
    %704 = vmatpush1.bf16.msra.mxu0 0
    %705 = vmatprep.subr.bf16.mxu0 0
    %706 = vmatpush1.bf16.msra.mxu0 0
    %707 = vmatprep.subr.bf16.mxu0 0
    %708 = vmatpush1.bf16.msra.mxu0 %v335
    %709 = vmatprep.subr.bf16.mxu0 0
    %710 = vmatpush1.bf16.msra.mxu0 %v334
    %711 = vmatprep.subr.bf16.mxu0 0
    %712 = vmatpush2.bf16.msra.mxu0 0
    %713 = vmatprep.subr.bf16.mxu0 0
    %714 = vmatpush2.bf16.msra.mxu0 0
    %715 = vmatprep.subr.bf16.mxu0 0
    %716 = vmatpush2.bf16.msra.mxu0 0
    %717 = vmatprep.subr.bf16.mxu0 0
    %718 = vmatpush2.bf16.msra.mxu0 0
    %719 = vmatprep.subr.bf16.mxu0 0
    %720 = vmatpush2.bf16.msra.mxu0 0
    %721 = vmatprep.subr.bf16.mxu0 0
    %722 = vmatpush2.bf16.msra.mxu0 0
    %723 = vmatprep.subr.bf16.mxu0 0
    %724 = vmatpush2.bf16.msra.mxu0 0
    %725 = vmatprep.subr.bf16.mxu0 0
    %726 = vmatpush2.bf16.msra.mxu0 0
    %727 = vmatprep.mubr.bf16.mxu0 0
    %728 = vmatmul.mubr.bf16.gmra.mxu0 %v693
    %v729 = vpop.f32.mrf.mxu0
    %v730 = vadd.f32 0.0, %v729
    %v731 = vpop.f32.mrf.mxu0
    %v732 = vpop.f32.mrf.mxu0
    %v733 = vpop.f32.mrf.mxu0
    %734 = vdwg.mxu0
    %v736 = vrot.slane %v730, 6
    %v738 = vadd.f32 %v213, %v736
    %v739 = vxor.u32 %v738, 2147483648
    %v740 = vmul.f32 %v739, 1.442695
    %v741 = vpow.pop %v740
    %v742 = vadd.f32 %v741, 1.0
    %v743 = vrcp.pop %v742
    %v744 = vmul.f32 1.0, %v743
    %v745 = vadd.f32 %v730, %v397
    %v747 = vrot.slane %v745, 6
    %748 = vrot.lane.b32.xlu0 %v747, 64
    %v749 = vpop.permute.xlu0 %748
    %v751 = vmul.f32 %v744, %v749
    %753 = vrot.lane.b32.xlu0 %v751, 64
    %v754 = vpop.permute.xlu0 %753
    %v756 = vadd.f32 %v213, %v754
    %v757 = vtanh.pop %v756
    %v758 = vsub.f32 1.0, %v744
    %760 = vrot.lane.b32.xlu0 %v757, 96
    %v761 = vpop.permute.xlu0 %760
    %v763 = vmul.f32 %v758, %v761
    %v765 = vrot.slane %v595, 2
    %v767 = vmul.f32 %v744, %v765
    %v768 = vadd.f32 %v763, %v767
    %770 = vrot.lane.b32.xlu0 %v686, 96
    %v771 = vpop.permute.xlu0 %770
    %s773 = scalar_lea.vmem %s10, 4
    %vm774 = vcmask 259076
    %775 = vst.msk [vmem:[%s773 - $0x4] sm:$0x30] %vm774, %v771
    %s776 = scalar_lea.vmem %s10, 10
    %vm777 = vcmask 519426
    %778 = vst.msk [vmem:[%s776 - $0x2] sm:$0xc] %vm777, %v768
    %v779 = vpack.c.bf16 %v686, %v686
    %v781 = vrot.slane %v779, 2
    %782 = vrot.lane.b32.xlu0 %v781, 96
    %v783 = vpop.permute.xlu0 %782
    %v785 = vsel %vm242, %v783, 0
    %787 = vmatprep.subr.bf16.mxu0 0
    %788 = vmatpush1.bf16.msra.mxu0 0
    %789 = vmatprep.subr.bf16.mxu0 0
    %790 = vmatpush1.bf16.msra.mxu0 0
    %791 = vmatprep.subr.bf16.mxu0 0
    %792 = vmatpush1.bf16.msra.mxu0 0
    %793 = vmatprep.subr.bf16.mxu0 0
    %794 = vmatpush1.bf16.msra.mxu0 0
    %795 = vmatprep.subr.bf16.mxu0 0
    %796 = vmatpush1.bf16.msra.mxu0 0
    %797 = vmatprep.subr.bf16.mxu0 0
    %798 = vmatpush1.bf16.msra.mxu0 0
    %799 = vmatprep.subr.bf16.mxu0 0
    %800 = vmatpush1.bf16.msra.mxu0 %v239
    %801 = vmatprep.subr.bf16.mxu0 0
    %802 = vmatpush1.bf16.msra.mxu0 %v238
    %803 = vmatprep.subr.bf16.mxu0 0
    %804 = vmatpush2.bf16.msra.mxu0 0
    %805 = vmatprep.subr.bf16.mxu0 0
    %806 = vmatpush2.bf16.msra.mxu0 0
    %807 = vmatprep.subr.bf16.mxu0 0
    %808 = vmatpush2.bf16.msra.mxu0 0
    %809 = vmatprep.subr.bf16.mxu0 0
    %810 = vmatpush2.bf16.msra.mxu0 0
    %811 = vmatprep.subr.bf16.mxu0 0
    %812 = vmatpush2.bf16.msra.mxu0 0
    %813 = vmatprep.subr.bf16.mxu0 0
    %814 = vmatpush2.bf16.msra.mxu0 0
    %815 = vmatprep.subr.bf16.mxu0 0
    %816 = vmatpush2.bf16.msra.mxu0 0
    %817 = vmatprep.subr.bf16.mxu0 0
    %818 = vmatpush2.bf16.msra.mxu0 0
    %819 = vmatprep.mubr.bf16.mxu0 0
    %820 = vmatmul.mubr.bf16.gmra.mxu0 %v785
    %v821 = vpop.f32.mrf.mxu0
    %v822 = vadd.f32 0.0, %v821
    %v823 = vpop.f32.mrf.mxu0
    %v824 = vpop.f32.mrf.mxu0
    %v825 = vpop.f32.mrf.mxu0
    %826 = vdwg.mxu0
    %v828 = vrot.slane %v822, 2
    %v830 = vadd.f32 %v124, %v828
    %v831 = vxor.u32 %v830, 2147483648
    %v832 = vmul.f32 %v831, 1.442695
    %v833 = vpow.pop %v832
    %v834 = vadd.f32 %v833, 1.0
    %v835 = vrcp.pop %v834
    %v836 = vmul.f32 1.0, %v835
    %v837 = vadd.f32 %v822, %v299
    %v839 = vrot.slane %v837, 2
    %840 = vrot.lane.b32.xlu0 %v839, 64
    %v841 = vpop.permute.xlu0 %840
    %v843 = vmul.f32 %v836, %v841
    %845 = vrot.lane.b32.xlu0 %v843, 64
    %v846 = vpop.permute.xlu0 %845
    %v848 = vadd.f32 %v124, %v846
    %v849 = vtanh.pop %v848
    %v850 = vsub.f32 1.0, %v836
    %852 = vrot.lane.b32.xlu0 %v849, 96
    %v853 = vpop.permute.xlu0 %852
    %v855 = vmul.f32 %v850, %v853
    %v856 = vrot.slane %v686, 6
    %v858 = vmul.f32 %v836, %v856
    %v859 = vadd.f32 %v855, %v858
    %v860 = vpack.c.bf16 %v768, %v768
    %v862 = vrot.slane %v860, 1
    %863 = vrot.lane.b32.xlu0 %v862, 96
    %v864 = vpop.permute.xlu0 %863
    %v866 = vsel %vm242, %v864, 0
    %868 = vmatprep.subr.bf16.mxu0 0
    %869 = vmatpush1.bf16.msra.mxu0 0
    %870 = vmatprep.subr.bf16.mxu0 0
    %871 = vmatpush1.bf16.msra.mxu0 0
    %872 = vmatprep.subr.bf16.mxu0 0
    %873 = vmatpush1.bf16.msra.mxu0 0
    %874 = vmatprep.subr.bf16.mxu0 0
    %875 = vmatpush1.bf16.msra.mxu0 0
    %876 = vmatprep.subr.bf16.mxu0 0
    %877 = vmatpush1.bf16.msra.mxu0 0
    %878 = vmatprep.subr.bf16.mxu0 0
    %879 = vmatpush1.bf16.msra.mxu0 0
    %880 = vmatprep.subr.bf16.mxu0 0
    %881 = vmatpush1.bf16.msra.mxu0 %v335
    %882 = vmatprep.subr.bf16.mxu0 0
    %883 = vmatpush1.bf16.msra.mxu0 %v334
    %884 = vmatprep.subr.bf16.mxu0 0
    %885 = vmatpush2.bf16.msra.mxu0 0
    %886 = vmatprep.subr.bf16.mxu0 0
    %887 = vmatpush2.bf16.msra.mxu0 0
    %888 = vmatprep.subr.bf16.mxu0 0
    %889 = vmatpush2.bf16.msra.mxu0 0
    %890 = vmatprep.subr.bf16.mxu0 0
    %891 = vmatpush2.bf16.msra.mxu0 0
    %892 = vmatprep.subr.bf16.mxu0 0
    %893 = vmatpush2.bf16.msra.mxu0 0
    %894 = vmatprep.subr.bf16.mxu0 0
    %895 = vmatpush2.bf16.msra.mxu0 0
    %896 = vmatprep.subr.bf16.mxu0 0
    %897 = vmatpush2.bf16.msra.mxu0 0
    %898 = vmatprep.subr.bf16.mxu0 0
    %899 = vmatpush2.bf16.msra.mxu0 0
    %900 = vmatprep.mubr.bf16.mxu0 0
    %901 = vmatmul.mubr.bf16.gmra.mxu0 %v866
    %v902 = vpop.f32.mrf.mxu0
    %v903 = vadd.f32 0.0, %v902
    %v904 = vpop.f32.mrf.mxu0
    %v905 = vpop.f32.mrf.mxu0
    %v906 = vpop.f32.mrf.mxu0
    %907 = vdwg.mxu0
    %v908 = vadd.f32 %v213, %v903
    %v909 = vxor.u32 %v908, 2147483648
    %v910 = vmul.f32 %v909, 1.442695
    %v911 = vpow.pop %v910
    %v912 = vadd.f32 %v911, 1.0
    %v913 = vrcp.pop %v912
    %v914 = vmul.f32 1.0, %v913
    %v915 = vadd.f32 %v903, %v397
    %917 = vrot.lane.b32.xlu0 %v915, 64
    %v918 = vpop.permute.xlu0 %917
    %v920 = vmul.f32 %v914, %v918
    %922 = vrot.lane.b32.xlu0 %v920, 64
    %v923 = vpop.permute.xlu0 %922
    %v925 = vadd.f32 %v213, %v923
    %v926 = vtanh.pop %v925
    %v927 = vsub.f32 1.0, %v914
    %929 = vrot.lane.b32.xlu0 %v926, 96
    %v930 = vpop.permute.xlu0 %929
    %v932 = vmul.f32 %v927, %v930
    %v934 = vrot.slane %v768, 2
    %v936 = vmul.f32 %v914, %v934
    %v937 = vadd.f32 %v932, %v936
    %939 = vrot.lane.b32.xlu0 %v859, 96
    %v940 = vpop.permute.xlu0 %939
    %s942 = scalar_lea.vmem %s10, 6
    %vm943 = vcmask 261126
    %944 = vst.msk [vmem:[%s942 - $0x6] sm:$0xc0] %vm943, %v940
    %s945 = scalar_lea.vmem %s10, 8
    %vm946 = vcmask 517376
    %947 = vst.msk [vmem:[%s945] sm:$0x3] %vm946, %v937
    %v948 = vpack.c.bf16 %v859, %v859
    %v950 = vrot.slane %v948, 3
    %951 = vrot.lane.b32.xlu0 %v950, 96
    %v952 = vpop.permute.xlu0 %951
    %v954 = vsel %vm242, %v952, 0
    %956 = vmatprep.subr.bf16.mxu0 0
    %957 = vmatpush1.bf16.msra.mxu0 0
    %958 = vmatprep.subr.bf16.mxu0 0
    %959 = vmatpush1.bf16.msra.mxu0 0
    %960 = vmatprep.subr.bf16.mxu0 0
    %961 = vmatpush1.bf16.msra.mxu0 0
    %962 = vmatprep.subr.bf16.mxu0 0
    %963 = vmatpush1.bf16.msra.mxu0 0
    %964 = vmatprep.subr.bf16.mxu0 0
    %965 = vmatpush1.bf16.msra.mxu0 0
    %966 = vmatprep.subr.bf16.mxu0 0
    %967 = vmatpush1.bf16.msra.mxu0 0
    %968 = vmatprep.subr.bf16.mxu0 0
    %969 = vmatpush1.bf16.msra.mxu0 %v239
    %970 = vmatprep.subr.bf16.mxu0 0
    %971 = vmatpush1.bf16.msra.mxu0 %v238
    %972 = vmatprep.subr.bf16.mxu0 0
    %973 = vmatpush2.bf16.msra.mxu0 0
    %974 = vmatprep.subr.bf16.mxu0 0
    %975 = vmatpush2.bf16.msra.mxu0 0
    %976 = vmatprep.subr.bf16.mxu0 0
    %977 = vmatpush2.bf16.msra.mxu0 0
    %978 = vmatprep.subr.bf16.mxu0 0
    %979 = vmatpush2.bf16.msra.mxu0 0
    %980 = vmatprep.subr.bf16.mxu0 0
    %981 = vmatpush2.bf16.msra.mxu0 0
    %982 = vmatprep.subr.bf16.mxu0 0
    %983 = vmatpush2.bf16.msra.mxu0 0
    %984 = vmatprep.subr.bf16.mxu0 0
    %985 = vmatpush2.bf16.msra.mxu0 0
    %986 = vmatprep.subr.bf16.mxu0 0
    %987 = vmatpush2.bf16.msra.mxu0 0
    %988 = vmatprep.mubr.bf16.mxu0 0
    %989 = vmatmul.mubr.bf16.gmra.mxu0 %v954
    %v990 = vpop.f32.mrf.mxu0
    %v991 = vadd.f32 0.0, %v990
    %v992 = vpop.f32.mrf.mxu0
    %v993 = vpop.f32.mrf.mxu0
    %v994 = vpop.f32.mrf.mxu0
    %995 = vdwg.mxu0
    %v996 = vadd.f32 %v129, %v991
    %v997 = vxor.u32 %v996, 2147483648
    %v998 = vmul.f32 %v997, 1.442695
    %v999 = vpow.pop %v998
    %v1000 = vadd.f32 %v999, 1.0
    %v1001 = vrcp.pop %v1000
    %v1002 = vmul.f32 1.0, %v1001
    %v1003 = vadd.f32 %v991, %v299
    %1005 = vrot.lane.b32.xlu0 %v1003, 64
    %v1006 = vpop.permute.xlu0 %1005
    %v1008 = vmul.f32 %v1002, %v1006
    %1010 = vrot.lane.b32.xlu0 %v1008, 64
    %v1011 = vpop.permute.xlu0 %1010
    %v1013 = vadd.f32 %v129, %v1011
    %v1014 = vtanh.pop %v1013
    %v1015 = vsub.f32 1.0, %v1002
    %1017 = vrot.lane.b32.xlu0 %v1014, 96
    %v1018 = vpop.permute.xlu0 %1017
    %v1020 = vmul.f32 %v1015, %v1018
    %v1021 = vrot.slane %v859, 6
    %v1023 = vmul.f32 %v1002, %v1021
    %v1024 = vadd.f32 %v1020, %v1023
    %v1025 = vpack.c.bf16 %v937, %v937
    %1027 = vrot.lane.b32.xlu0 %v1025, 96
    %v1028 = vpop.permute.xlu0 %1027
    %v1030 = vsel %vm242, %v1028, 0
    %1032 = vmatprep.subr.bf16.mxu0 0
    %1033 = vmatpush1.bf16.msra.mxu0 0
    %1034 = vmatprep.subr.bf16.mxu0 0
    %1035 = vmatpush1.bf16.msra.mxu0 0
    %1036 = vmatprep.subr.bf16.mxu0 0
    %1037 = vmatpush1.bf16.msra.mxu0 0
    %1038 = vmatprep.subr.bf16.mxu0 0
    %1039 = vmatpush1.bf16.msra.mxu0 0
    %1040 = vmatprep.subr.bf16.mxu0 0
    %1041 = vmatpush1.bf16.msra.mxu0 0
    %1042 = vmatprep.subr.bf16.mxu0 0
    %1043 = vmatpush1.bf16.msra.mxu0 0
    %1044 = vmatprep.subr.bf16.mxu0 0
    %1045 = vmatpush1.bf16.msra.mxu0 %v335
    %1046 = vmatprep.subr.bf16.mxu0 0
    %1047 = vmatpush1.bf16.msra.mxu0 %v334
    %1048 = vmatprep.subr.bf16.mxu0 0
    %1049 = vmatpush2.bf16.msra.mxu0 0
    %1050 = vmatprep.subr.bf16.mxu0 0
    %1051 = vmatpush2.bf16.msra.mxu0 0
    %1052 = vmatprep.subr.bf16.mxu0 0
    %1053 = vmatpush2.bf16.msra.mxu0 0
    %1054 = vmatprep.subr.bf16.mxu0 0
    %1055 = vmatpush2.bf16.msra.mxu0 0
    %1056 = vmatprep.subr.bf16.mxu0 0
    %1057 = vmatpush2.bf16.msra.mxu0 0
    %1058 = vmatprep.subr.bf16.mxu0 0
    %1059 = vmatpush2.bf16.msra.mxu0 0
    %1060 = vmatprep.subr.bf16.mxu0 0
    %1061 = vmatpush2.bf16.msra.mxu0 0
    %1062 = vmatprep.subr.bf16.mxu0 0
    %1063 = vmatpush2.bf16.msra.mxu0 0
    %1064 = vmatprep.mubr.bf16.mxu0 0
    %1065 = vmatmul.mubr.bf16.gmra.mxu0 %v1030
    %v1066 = vpop.f32.mrf.mxu0
    %v1067 = vadd.f32 0.0, %v1066
    %v1068 = vpop.f32.mrf.mxu0
    %v1069 = vpop.f32.mrf.mxu0
    %v1070 = vpop.f32.mrf.mxu0
    %1071 = vdwg.mxu0
    %v1073 = vrot.slane %v1067, 2
    %v1075 = vadd.f32 %v208, %v1073
    %v1076 = vxor.u32 %v1075, 2147483648
    %v1077 = vmul.f32 %v1076, 1.442695
    %v1078 = vpow.pop %v1077
    %v1079 = vadd.f32 %v1078, 1.0
    %v1080 = vrcp.pop %v1079
    %v1081 = vmul.f32 1.0, %v1080
    %v1082 = vadd.f32 %v1067, %v397
    %v1084 = vrot.slane %v1082, 2
    %1085 = vrot.lane.b32.xlu0 %v1084, 64
    %v1086 = vpop.permute.xlu0 %1085
    %v1088 = vmul.f32 %v1081, %v1086
    %1090 = vrot.lane.b32.xlu0 %v1088, 64
    %v1091 = vpop.permute.xlu0 %1090
    %v1093 = vadd.f32 %v208, %v1091
    %v1094 = vtanh.pop %v1093
    %v1095 = vsub.f32 1.0, %v1081
    %1097 = vrot.lane.b32.xlu0 %v1094, 96
    %v1098 = vpop.permute.xlu0 %1097
    %v1100 = vmul.f32 %v1095, %v1098
    %v1102 = vrot.slane %v937, 2
    %v1104 = vmul.f32 %v1081, %v1102
    %v1105 = vadd.f32 %v1100, %v1104
    %1107 = vrot.lane.b32.xlu0 %v1024, 96
    %v1108 = vpop.permute.xlu0 %1107
    %1110 = vst.msk [vmem:[%s945] sm:$0x3] %vm429, %v1108
    %1111 = vst.msk [vmem:[%s942 - $0x6] sm:$0xc0] %vm432, %v1105
    %v1112 = vpack.c.bf16 %v1024, %v1024
    %1114 = vrot.lane.b32.xlu0 %v1112, 96
    %v1115 = vpop.permute.xlu0 %1114
    %v1117 = vsel %vm242, %v1115, 0
    %1119 = vmatprep.subr.bf16.mxu0 0
    %1120 = vmatpush1.bf16.msra.mxu0 0
    %1121 = vmatprep.subr.bf16.mxu0 0
    %1122 = vmatpush1.bf16.msra.mxu0 0
    %1123 = vmatprep.subr.bf16.mxu0 0
    %1124 = vmatpush1.bf16.msra.mxu0 0
    %1125 = vmatprep.subr.bf16.mxu0 0
    %1126 = vmatpush1.bf16.msra.mxu0 0
    %1127 = vmatprep.subr.bf16.mxu0 0
    %1128 = vmatpush1.bf16.msra.mxu0 0
    %1129 = vmatprep.subr.bf16.mxu0 0
    %1130 = vmatpush1.bf16.msra.mxu0 0
    %1131 = vmatprep.subr.bf16.mxu0 0
    %1132 = vmatpush1.bf16.msra.mxu0 %v239
    %1133 = vmatprep.subr.bf16.mxu0 0
    %1134 = vmatpush1.bf16.msra.mxu0 %v238
    %1135 = vmatprep.subr.bf16.mxu0 0
    %1136 = vmatpush2.bf16.msra.mxu0 0
    %1137 = vmatprep.subr.bf16.mxu0 0
    %1138 = vmatpush2.bf16.msra.mxu0 0
    %1139 = vmatprep.subr.bf16.mxu0 0
    %1140 = vmatpush2.bf16.msra.mxu0 0
    %1141 = vmatprep.subr.bf16.mxu0 0
    %1142 = vmatpush2.bf16.msra.mxu0 0
    %1143 = vmatprep.subr.bf16.mxu0 0
    %1144 = vmatpush2.bf16.msra.mxu0 0
    %1145 = vmatprep.subr.bf16.mxu0 0
    %1146 = vmatpush2.bf16.msra.mxu0 0
    %1147 = vmatprep.subr.bf16.mxu0 0
    %1148 = vmatpush2.bf16.msra.mxu0 0
    %1149 = vmatprep.subr.bf16.mxu0 0
    %1150 = vmatpush2.bf16.msra.mxu0 0
    %1151 = vmatprep.mubr.bf16.mxu0 0
    %1152 = vmatmul.mubr.bf16.gmra.mxu0 %v1117
    %v1153 = vpop.f32.mrf.mxu0
    %v1154 = vadd.f32 0.0, %v1153
    %v1155 = vpop.f32.mrf.mxu0
    %v1156 = vpop.f32.mrf.mxu0
    %v1157 = vpop.f32.mrf.mxu0
    %1158 = vdwg.mxu0
    %v1160 = vrot.slane %v1154, 6
    %v1162 = vadd.f32 %v129, %v1160
    %v1163 = vxor.u32 %v1162, 2147483648
    %v1164 = vmul.f32 %v1163, 1.442695
    %v1165 = vpow.pop %v1164
    %v1166 = vadd.f32 %v1165, 1.0
    %v1167 = vrcp.pop %v1166
    %v1168 = vmul.f32 1.0, %v1167
    %v1169 = vadd.f32 %v1154, %v299
    %v1171 = vrot.slane %v1169, 6
    %1172 = vrot.lane.b32.xlu0 %v1171, 64
    %v1173 = vpop.permute.xlu0 %1172
    %v1175 = vmul.f32 %v1168, %v1173
    %1177 = vrot.lane.b32.xlu0 %v1175, 64
    %v1178 = vpop.permute.xlu0 %1177
    %v1180 = vadd.f32 %v129, %v1178
    %v1181 = vtanh.pop %v1180
    %v1182 = vsub.f32 1.0, %v1168
    %1184 = vrot.lane.b32.xlu0 %v1181, 96
    %v1185 = vpop.permute.xlu0 %1184
    %v1187 = vmul.f32 %v1182, %v1185
    %v1188 = vrot.slane %v1024, 6
    %v1190 = vmul.f32 %v1168, %v1188
    %v1191 = vadd.f32 %v1187, %v1190
    %v1192 = vpack.c.bf16 %v1105, %v1105
    %v1194 = vrot.slane %v1192, 3
    %1195 = vrot.lane.b32.xlu0 %v1194, 96
    %v1196 = vpop.permute.xlu0 %1195
    %v1198 = vsel %vm242, %v1196, 0
    %1200 = vmatprep.subr.bf16.mxu0 0
    %1201 = vmatpush1.bf16.msra.mxu0 0
    %1202 = vmatprep.subr.bf16.mxu0 0
    %1203 = vmatpush1.bf16.msra.mxu0 0
    %1204 = vmatprep.subr.bf16.mxu0 0
    %1205 = vmatpush1.bf16.msra.mxu0 0
    %1206 = vmatprep.subr.bf16.mxu0 0
    %1207 = vmatpush1.bf16.msra.mxu0 0
    %1208 = vmatprep.subr.bf16.mxu0 0
    %1209 = vmatpush1.bf16.msra.mxu0 0
    %1210 = vmatprep.subr.bf16.mxu0 0
    %1211 = vmatpush1.bf16.msra.mxu0 0
    %1212 = vmatprep.subr.bf16.mxu0 0
    %1213 = vmatpush1.bf16.msra.mxu0 %v335
    %1214 = vmatprep.subr.bf16.mxu0 0
    %1215 = vmatpush1.bf16.msra.mxu0 %v334
    %1216 = vmatprep.subr.bf16.mxu0 0
    %1217 = vmatpush2.bf16.msra.mxu0 0
    %1218 = vmatprep.subr.bf16.mxu0 0
    %1219 = vmatpush2.bf16.msra.mxu0 0
    %1220 = vmatprep.subr.bf16.mxu0 0
    %1221 = vmatpush2.bf16.msra.mxu0 0
    %1222 = vmatprep.subr.bf16.mxu0 0
    %1223 = vmatpush2.bf16.msra.mxu0 0
    %1224 = vmatprep.subr.bf16.mxu0 0
    %1225 = vmatpush2.bf16.msra.mxu0 0
    %1226 = vmatprep.subr.bf16.mxu0 0
    %1227 = vmatpush2.bf16.msra.mxu0 0
    %1228 = vmatprep.subr.bf16.mxu0 0
    %1229 = vmatpush2.bf16.msra.mxu0 0
    %1230 = vmatprep.subr.bf16.mxu0 0
    %1231 = vmatpush2.bf16.msra.mxu0 0
    %1232 = vmatprep.mubr.bf16.mxu0 0
    %1233 = vmatmul.mubr.bf16.gmra.mxu0 %v1198
    %v1234 = vpop.f32.mrf.mxu0
    %v1235 = vadd.f32 0.0, %v1234
    %v1236 = vpop.f32.mrf.mxu0
    %v1237 = vpop.f32.mrf.mxu0
    %v1238 = vpop.f32.mrf.mxu0
    %1239 = vdwg.mxu0
    %v1241 = vrot.slane %v1235, 4
    %v1243 = vadd.f32 %v208, %v1241
    %v1244 = vxor.u32 %v1243, 2147483648
    %v1245 = vmul.f32 %v1244, 1.442695
    %v1246 = vpow.pop %v1245
    %v1247 = vadd.f32 %v1246, 1.0
    %v1248 = vrcp.pop %v1247
    %v1249 = vmul.f32 1.0, %v1248
    %v1250 = vadd.f32 %v1235, %v397
    %v1252 = vrot.slane %v1250, 4
    %1253 = vrot.lane.b32.xlu0 %v1252, 64
    %v1254 = vpop.permute.xlu0 %1253
    %v1256 = vmul.f32 %v1249, %v1254
    %1258 = vrot.lane.b32.xlu0 %v1256, 64
    %v1259 = vpop.permute.xlu0 %1258
    %v1261 = vadd.f32 %v208, %v1259
    %v1262 = vtanh.pop %v1261
    %v1263 = vsub.f32 1.0, %v1249
    %1265 = vrot.lane.b32.xlu0 %v1262, 96
    %v1266 = vpop.permute.xlu0 %1265
    %v1268 = vmul.f32 %v1263, %v1266
    %v1270 = vrot.slane %v1105, 2
    %v1272 = vmul.f32 %v1249, %v1270
    %v1273 = vadd.f32 %v1268, %v1272
    %1275 = vrot.lane.b32.xlu0 %v1191, 96
    %v1276 = vpop.permute.xlu0 %1275
    %1278 = vst.msk [vmem:[%s776 - $0x2] sm:$0xc] %vm601, %v1276
    %1279 = vst.msk [vmem:[%s773 - $0x4] sm:$0x30] %vm604, %v1273
    %v1280 = vpack.c.bf16 %v1191, %v1191
    %v1282 = vrot.slane %v1280, 1
    %1283 = vrot.lane.b32.xlu0 %v1282, 96
    %v1284 = vpop.permute.xlu0 %1283
    %v1286 = vsel %vm242, %v1284, 0
    %1288 = vmatprep.subr.bf16.mxu0 0
    %1289 = vmatpush1.bf16.msra.mxu0 0
    %1290 = vmatprep.subr.bf16.mxu0 0
    %1291 = vmatpush1.bf16.msra.mxu0 0
    %1292 = vmatprep.subr.bf16.mxu0 0
    %1293 = vmatpush1.bf16.msra.mxu0 0
    %1294 = vmatprep.subr.bf16.mxu0 0
    %1295 = vmatpush1.bf16.msra.mxu0 0
    %1296 = vmatprep.subr.bf16.mxu0 0
    %1297 = vmatpush1.bf16.msra.mxu0 0
    %1298 = vmatprep.subr.bf16.mxu0 0
    %1299 = vmatpush1.bf16.msra.mxu0 0
    %1300 = vmatprep.subr.bf16.mxu0 0
    %1301 = vmatpush1.bf16.msra.mxu0 %v239
    %1302 = vmatprep.subr.bf16.mxu0 0
    %1303 = vmatpush1.bf16.msra.mxu0 %v238
    %1304 = vmatprep.subr.bf16.mxu0 0
    %1305 = vmatpush2.bf16.msra.mxu0 0
    %1306 = vmatprep.subr.bf16.mxu0 0
    %1307 = vmatpush2.bf16.msra.mxu0 0
    %1308 = vmatprep.subr.bf16.mxu0 0
    %1309 = vmatpush2.bf16.msra.mxu0 0
    %1310 = vmatprep.subr.bf16.mxu0 0
    %1311 = vmatpush2.bf16.msra.mxu0 0
    %1312 = vmatprep.subr.bf16.mxu0 0
    %1313 = vmatpush2.bf16.msra.mxu0 0
    %1314 = vmatprep.subr.bf16.mxu0 0
    %1315 = vmatpush2.bf16.msra.mxu0 0
    %1316 = vmatprep.subr.bf16.mxu0 0
    %1317 = vmatpush2.bf16.msra.mxu0 0
    %1318 = vmatprep.subr.bf16.mxu0 0
    %1319 = vmatpush2.bf16.msra.mxu0 0
    %1320 = vmatprep.mubr.bf16.mxu0 0
    %1321 = vmatmul.mubr.bf16.gmra.mxu0 %v1286
    %v1322 = vpop.f32.mrf.mxu0
    %v1323 = vadd.f32 0.0, %v1322
    %v1324 = vpop.f32.mrf.mxu0
    %v1325 = vpop.f32.mrf.mxu0
    %v1326 = vpop.f32.mrf.mxu0
    %1327 = vdwg.mxu0
    %v1329 = vrot.slane %v1323, 4
    %v1331 = vadd.f32 %v129, %v1329
    %v1332 = vxor.u32 %v1331, 2147483648
    %v1333 = vmul.f32 %v1332, 1.442695
    %v1334 = vpow.pop %v1333
    %v1335 = vadd.f32 %v1334, 1.0
    %v1336 = vrcp.pop %v1335
    %v1337 = vmul.f32 1.0, %v1336
    %v1338 = vadd.f32 %v1323, %v299
    %v1340 = vrot.slane %v1338, 4
    %1341 = vrot.lane.b32.xlu0 %v1340, 64
    %v1342 = vpop.permute.xlu0 %1341
    %v1344 = vmul.f32 %v1337, %v1342
    %1346 = vrot.lane.b32.xlu0 %v1344, 64
    %v1347 = vpop.permute.xlu0 %1346
    %v1349 = vadd.f32 %v129, %v1347
    %v1350 = vtanh.pop %v1349
    %v1351 = vsub.f32 1.0, %v1337
    %1353 = vrot.lane.b32.xlu0 %v1350, 96
    %v1354 = vpop.permute.xlu0 %1353
    %v1356 = vmul.f32 %v1351, %v1354
    %v1357 = vrot.slane %v1191, 6
    %v1359 = vmul.f32 %v1337, %v1357
    %v1360 = vadd.f32 %v1356, %v1359
    %v1361 = vpack.c.bf16 %v1273, %v1273
    %v1363 = vrot.slane %v1361, 2
    %1364 = vrot.lane.b32.xlu0 %v1363, 96
    %v1365 = vpop.permute.xlu0 %1364
    %v1367 = vsel %vm242, %v1365, 0
    %1369 = vmatprep.subr.bf16.mxu0 0
    %1370 = vmatpush1.bf16.msra.mxu0 0
    %1371 = vmatprep.subr.bf16.mxu0 0
    %1372 = vmatpush1.bf16.msra.mxu0 0
    %1373 = vmatprep.subr.bf16.mxu0 0
    %1374 = vmatpush1.bf16.msra.mxu0 0
    %1375 = vmatprep.subr.bf16.mxu0 0
    %1376 = vmatpush1.bf16.msra.mxu0 0
    %1377 = vmatprep.subr.bf16.mxu0 0
    %1378 = vmatpush1.bf16.msra.mxu0 0
    %1379 = vmatprep.subr.bf16.mxu0 0
    %1380 = vmatpush1.bf16.msra.mxu0 0
    %1381 = vmatprep.subr.bf16.mxu0 0
    %1382 = vmatpush1.bf16.msra.mxu0 %v335
    %1383 = vmatprep.subr.bf16.mxu0 0
    %1384 = vmatpush1.bf16.msra.mxu0 %v334
    %1385 = vmatprep.subr.bf16.mxu0 0
    %1386 = vmatpush2.bf16.msra.mxu0 0
    %1387 = vmatprep.subr.bf16.mxu0 0
    %1388 = vmatpush2.bf16.msra.mxu0 0
    %1389 = vmatprep.subr.bf16.mxu0 0
    %1390 = vmatpush2.bf16.msra.mxu0 0
    %1391 = vmatprep.subr.bf16.mxu0 0
    %1392 = vmatpush2.bf16.msra.mxu0 0
    %1393 = vmatprep.subr.bf16.mxu0 0
    %1394 = vmatpush2.bf16.msra.mxu0 0
    %1395 = vmatprep.subr.bf16.mxu0 0
    %1396 = vmatpush2.bf16.msra.mxu0 0
    %1397 = vmatprep.subr.bf16.mxu0 0
    %1398 = vmatpush2.bf16.msra.mxu0 0
    %1399 = vmatprep.subr.bf16.mxu0 0
    %1400 = vmatpush2.bf16.msra.mxu0 0
    %1401 = vmatprep.mubr.bf16.mxu0 0
    %1402 = vmatmul.mubr.bf16.gmra.mxu0 %v1367
    %v1403 = vpop.f32.mrf.mxu0
    %v1404 = vadd.f32 0.0, %v1403
    %v1405 = vpop.f32.mrf.mxu0
    %v1406 = vpop.f32.mrf.mxu0
    %v1407 = vpop.f32.mrf.mxu0
    %1408 = vdwg.mxu0
    %v1410 = vrot.slane %v1404, 6
    %v1412 = vadd.f32 %v208, %v1410
    %v1413 = vxor.u32 %v1412, 2147483648
    %v1414 = vmul.f32 %v1413, 1.442695
    %v1415 = vpow.pop %v1414
    %v1416 = vadd.f32 %v1415, 1.0
    %v1417 = vrcp.pop %v1416
    %v1418 = vmul.f32 1.0, %v1417
    %v1419 = vadd.f32 %v1404, %v397
    %v1421 = vrot.slane %v1419, 6
    %1422 = vrot.lane.b32.xlu0 %v1421, 64
    %v1423 = vpop.permute.xlu0 %1422
    %v1425 = vmul.f32 %v1418, %v1423
    %1427 = vrot.lane.b32.xlu0 %v1425, 64
    %v1428 = vpop.permute.xlu0 %1427
    %v1430 = vadd.f32 %v208, %v1428
    %v1431 = vtanh.pop %v1430
    %v1432 = vsub.f32 1.0, %v1418
    %1434 = vrot.lane.b32.xlu0 %v1431, 96
    %v1435 = vpop.permute.xlu0 %1434
    %v1437 = vmul.f32 %v1432, %v1435
    %v1439 = vrot.slane %v1273, 2
    %v1441 = vmul.f32 %v1418, %v1439
    %v1442 = vadd.f32 %v1437, %v1441
    %1444 = vrot.lane.b32.xlu0 %v1360, 96
    %v1445 = vpop.permute.xlu0 %1444
    %1447 = vst.msk [vmem:[%s603 - $0x4] sm:$0x30] %vm774, %v1445
    %1448 = vst.msk [vmem:[%s600 - $0x2] sm:$0xc] %vm777, %v1442
    %v1449 = vpack.c.bf16 %v1360, %v1360
    %v1451 = vrot.slane %v1449, 2
    %1452 = vrot.lane.b32.xlu0 %v1451, 96
    %v1453 = vpop.permute.xlu0 %1452
    %v1455 = vsel %vm242, %v1453, 0
    %1457 = vmatprep.subr.bf16.mxu0 0
    %1458 = vmatpush1.bf16.msra.mxu0 0
    %1459 = vmatprep.subr.bf16.mxu0 0
    %1460 = vmatpush1.bf16.msra.mxu0 0
    %1461 = vmatprep.subr.bf16.mxu0 0
    %1462 = vmatpush1.bf16.msra.mxu0 0
    %1463 = vmatprep.subr.bf16.mxu0 0
    %1464 = vmatpush1.bf16.msra.mxu0 0
    %1465 = vmatprep.subr.bf16.mxu0 0
    %1466 = vmatpush1.bf16.msra.mxu0 0
    %1467 = vmatprep.subr.bf16.mxu0 0
    %1468 = vmatpush1.bf16.msra.mxu0 0
    %1469 = vmatprep.subr.bf16.mxu0 0
    %1470 = vmatpush1.bf16.msra.mxu0 %v239
    %1471 = vmatprep.subr.bf16.mxu0 0
    %1472 = vmatpush1.bf16.msra.mxu0 %v238
    %1473 = vmatprep.subr.bf16.mxu0 0
    %1474 = vmatpush2.bf16.msra.mxu0 0
    %1475 = vmatprep.subr.bf16.mxu0 0
    %1476 = vmatpush2.bf16.msra.mxu0 0
    %1477 = vmatprep.subr.bf16.mxu0 0
    %1478 = vmatpush2.bf16.msra.mxu0 0
    %1479 = vmatprep.subr.bf16.mxu0 0
    %1480 = vmatpush2.bf16.msra.mxu0 0
    %1481 = vmatprep.subr.bf16.mxu0 0
    %1482 = vmatpush2.bf16.msra.mxu0 0
    %1483 = vmatprep.subr.bf16.mxu0 0
    %1484 = vmatpush2.bf16.msra.mxu0 0
    %1485 = vmatprep.subr.bf16.mxu0 0
    %1486 = vmatpush2.bf16.msra.mxu0 0
    %1487 = vmatprep.subr.bf16.mxu0 0
    %1488 = vmatpush2.bf16.msra.mxu0 0
    %1489 = vmatprep.mubr.bf16.mxu0 0
    %1490 = vmatmul.mubr.bf16.gmra.mxu0 %v1455
    %v1491 = vpop.f32.mrf.mxu0
    %v1492 = vadd.f32 0.0, %v1491
    %v1493 = vpop.f32.mrf.mxu0
    %v1494 = vpop.f32.mrf.mxu0
    %v1495 = vpop.f32.mrf.mxu0
    %1496 = vdwg.mxu0
    %v1498 = vrot.slane %v1492, 2
    %v1500 = vadd.f32 %v129, %v1498
    %v1501 = vxor.u32 %v1500, 2147483648
    %v1502 = vmul.f32 %v1501, 1.442695
    %v1503 = vpow.pop %v1502
    %v1504 = vadd.f32 %v1503, 1.0
    %v1505 = vrcp.pop %v1504
    %v1506 = vmul.f32 1.0, %v1505
    %v1507 = vadd.f32 %v1492, %v299
    %v1509 = vrot.slane %v1507, 2
    %1510 = vrot.lane.b32.xlu0 %v1509, 64
    %v1511 = vpop.permute.xlu0 %1510
    %v1513 = vmul.f32 %v1506, %v1511
    %1515 = vrot.lane.b32.xlu0 %v1513, 64
    %v1516 = vpop.permute.xlu0 %1515
    %v1518 = vadd.f32 %v129, %v1516
    %v1519 = vtanh.pop %v1518
    %v1520 = vsub.f32 1.0, %v1506
    %1522 = vrot.lane.b32.xlu0 %v1519, 96
    %v1523 = vpop.permute.xlu0 %1522
    %v1525 = vmul.f32 %v1520, %v1523
    %v1526 = vrot.slane %v1360, 6
    %v1528 = vmul.f32 %v1506, %v1526
    %v1529 = vadd.f32 %v1525, %v1528
    %v1530 = vpack.c.bf16 %v1442, %v1442
    %v1532 = vrot.slane %v1530, 1
    %1533 = vrot.lane.b32.xlu0 %v1532, 96
    %v1534 = vpop.permute.xlu0 %1533
    %v1536 = vsel %vm242, %v1534, 0
    %1538 = vmatprep.subr.bf16.mxu0 0
    %1539 = vmatpush1.bf16.msra.mxu0 0
    %1540 = vmatprep.subr.bf16.mxu0 0
    %1541 = vmatpush1.bf16.msra.mxu0 0
    %1542 = vmatprep.subr.bf16.mxu0 0
    %1543 = vmatpush1.bf16.msra.mxu0 0
    %1544 = vmatprep.subr.bf16.mxu0 0
    %1545 = vmatpush1.bf16.msra.mxu0 0
    %1546 = vmatprep.subr.bf16.mxu0 0
    %1547 = vmatpush1.bf16.msra.mxu0 0
    %1548 = vmatprep.subr.bf16.mxu0 0
    %1549 = vmatpush1.bf16.msra.mxu0 0
    %1550 = vmatprep.subr.bf16.mxu0 0
    %1551 = vmatpush1.bf16.msra.mxu0 %v335
    %1552 = vmatprep.subr.bf16.mxu0 0
    %1553 = vmatpush1.bf16.msra.mxu0 %v334
    %1554 = vmatprep.subr.bf16.mxu0 0
    %1555 = vmatpush2.bf16.msra.mxu0 0
    %1556 = vmatprep.subr.bf16.mxu0 0
    %1557 = vmatpush2.bf16.msra.mxu0 0
    %1558 = vmatprep.subr.bf16.mxu0 0
    %1559 = vmatpush2.bf16.msra.mxu0 0
    %1560 = vmatprep.subr.bf16.mxu0 0
    %1561 = vmatpush2.bf16.msra.mxu0 0
    %1562 = vmatprep.subr.bf16.mxu0 0
    %1563 = vmatpush2.bf16.msra.mxu0 0
    %1564 = vmatprep.subr.bf16.mxu0 0
    %1565 = vmatpush2.bf16.msra.mxu0 0
    %1566 = vmatprep.subr.bf16.mxu0 0
    %1567 = vmatpush2.bf16.msra.mxu0 0
    %1568 = vmatprep.subr.bf16.mxu0 0
    %1569 = vmatpush2.bf16.msra.mxu0 0
    %1570 = vmatprep.mubr.bf16.mxu0 0
    %1571 = vmatmul.mubr.bf16.gmra.mxu0 %v1536
    %v1572 = vpop.f32.mrf.mxu0
    %v1573 = vadd.f32 0.0, %v1572
    %v1574 = vpop.f32.mrf.mxu0
    %v1575 = vpop.f32.mrf.mxu0
    %v1576 = vpop.f32.mrf.mxu0
    %1577 = vdwg.mxu0
    %v1578 = vadd.f32 %v208, %v1573
    %v1579 = vxor.u32 %v1578, 2147483648
    %v1580 = vmul.f32 %v1579, 1.442695
    %v1581 = vpow.pop %v1580
    %v1582 = vadd.f32 %v1581, 1.0
    %v1583 = vrcp.pop %v1582
    %v1584 = vmul.f32 1.0, %v1583
    %v1585 = vadd.f32 %v1573, %v397
    %1587 = vrot.lane.b32.xlu0 %v1585, 64
    %v1588 = vpop.permute.xlu0 %1587
    %v1590 = vmul.f32 %v1584, %v1588
    %1592 = vrot.lane.b32.xlu0 %v1590, 64
    %v1593 = vpop.permute.xlu0 %1592
    %v1595 = vadd.f32 %v208, %v1593
    %v1596 = vtanh.pop %v1595
    %v1597 = vsub.f32 1.0, %v1584
    %1599 = vrot.lane.b32.xlu0 %v1596, 96
    %v1600 = vpop.permute.xlu0 %1599
    %v1602 = vmul.f32 %v1597, %v1600
    %v1604 = vrot.slane %v1442, 2
    %v1606 = vmul.f32 %v1584, %v1604
    %v1607 = vadd.f32 %v1602, %v1606
    %1609 = vrot.lane.b32.xlu0 %v1529, 96
    %v1610 = vpop.permute.xlu0 %1609
    %1612 = vst.msk [vmem:[%s431 - $0x6] sm:$0xc0] %vm943, %v1610
    %1613 = vst.msk [vmem:[%s10] sm:$0x3] %vm946, %v1607
    %1614 = vst.msk [vmem:[#allocation2 - $0x6] sm:$0xc0] %vm943, %v1610
    %1616 = vrot.lane.b32.xlu0 %v1607, 96
    %v1617 = vpop.permute.xlu0 %1616
    %s1619 = scalar_lea.vmem [#allocation2], 2
    %1620 = vst.msk [vmem:[%s1619] sm:$0x3] %vm429, %v1617
    // Predicated region
    $region42: #{text_encoder_forward.1} parent=1 // pred_check
      _
    $region43: #{text_encoder_forward.1} parent=1 // pred_check_branch
      %1622 = sbr.rel (0) target = $region45
    $region44: #{text_encoder_forward.1} parent=1 // pred_region
      _
    $region45: #{text_encoder_forward.1} parent=1 // pred_fallthru
      _
    // Predicated region
    $region46: #{text_encoder_forward.1} parent=1 // pred_check
      _
    $region47: #{text_encoder_forward.1} parent=1 // pred_check_branch
      %1624 = sbr.rel (0) target = $region49
    $region48: #{text_encoder_forward.1} parent=1 // pred_region
      %s1626 = ssub.s32 64, 64
      %1627 = vsyncadd [#allocation3], %s1626
      %s1628 = sshll.u32 [#allocation2], 4
      %s1629 = int_to_ptr.vmem [resolvable:$true] %s1628
      %1634 = dma.vmem_to_hbm [thread:$0]  %s1629, 64, %s11, [#allocation3], 32, 32, 2
    $region49: #{text_encoder_forward.1} parent=1 // pred_fallthru
      _
    // Predicated region
    $region50: #{text_encoder_forward.1} parent=1 // pred_check
      _
    $region51: #{text_encoder_forward.1} parent=1 // pred_check_branch
      %1636 = sbr.rel (0) target = $region53
    $region52: #{text_encoder_forward.1} parent=1 // pred_region
      _
    $region53: #{text_encoder_forward.1} parent=1 // pred_fallthru
      _
    // Predicated region
    $region54: #{text_encoder_forward.1} parent=1 // pred_check
      _
    $region55: #{text_encoder_forward.1} parent=1 // pred_check_branch
      %1638 = sbr.rel (0) target = $region57
    $region56: #{text_encoder_forward.1} parent=1 // pred_region
      %1639 = dma.done [#allocation3], 64
    $region57: #{text_encoder_forward.1} parent=1 // pred_fallthru
      _
    %1640 = vsyncpa [#allocation3], 1

</llo_original>
